<compile_context>
chip_gen: v7x
topology: tpu7x:2x2x1
jax: 0.10.0
libtpu: 0.0.40
codegen_flags: <defaults>
</compile_context>

<pallas_src>
import math
import numpy as np
import jax
import jax.numpy as jnp
from jax.experimental import pallas as pl
from jax.experimental.pallas import tpu as pltpu

# ---- small synthetic config consistent with PSPModule(features=4, out_features=8) ----
N, FEATURES, H, W = 2, 4, 16, 16
OUT_FEATURES = 8
SIZES = (1, 2, 3, 6)
S = len(SIZES)
HW = H * W
C_CAT = FEATURES + S * OUT_FEATURES     # 4 + 4*8 = 36
BN_EPS = 1e-5


# ---------------- parameter / operator setup (plain numpy glue) ----------------
def adaptive_pool_matrix(in_size, out_size):
    """Row-stochastic matrix implementing nn.AdaptiveAvgPool1d semantics."""
    P = np.zeros((out_size, in_size), dtype=np.float32)
    for i in range(out_size):
        start = (i * in_size) // out_size
        end = -((-(i + 1) * in_size) // out_size)   # ceil((i+1)*in/out)
        P[i, start:end] = 1.0 / float(end - start)
    return P


def bilinear_upsample_matrix(out_size, in_size):
    """Matrix implementing F.upsample(mode='bilinear', align_corners=True) along one axis."""
    U = np.zeros((out_size, in_size), dtype=np.float32)
    if in_size == 1:
        U[:, 0] = 1.0
        return U
    for i in range(out_size):
        src = i * (in_size - 1) / (out_size - 1)
        k0 = int(math.floor(src))
        k1 = min(k0 + 1, in_size - 1)
        w = src - k0
        U[i, k0] += 1.0 - w
        U[i, k1] += w
    return U


def build_spatial_operators():
    """Per-stage combined (upsample @ pool) spatial operator, kron'ed over H and W."""
    mats = []
    for s in SIZES:
        Mh = bilinear_upsample_matrix(H, s) @ adaptive_pool_matrix(H, s)   # (H, H)
        Mw = bilinear_upsample_matrix(W, s) @ adaptive_pool_matrix(W, s)   # (W, W)
        mats.append(np.kron(Mh, Mw))                                       # (HW, HW)
    return jnp.asarray(np.stack(mats, axis=0), dtype=jnp.float32)          # (S, HW, HW)


def build_conv3x3_masks():
    """Per-tap (9, 1, HW) boundary masks for the padding=1 3x3 conv, precomputed on host."""
    masks = np.zeros((9, 1, HW), dtype=np.float32)
    for k in range(9):
        oy, ox = k // 3 - 1, k % 3 - 1
        for h in range(H):
            for w in range(W):
                if 0 <= h + oy < H and 0 <= w + ox < W:
                    masks[k, 0, h * W + w] = 1.0
    return jnp.asarray(masks)


# ---------------- fused Pallas kernel (one batch element per grid step) ----------------
def _psp_fused_kernel(x_ref, mT_ref, w1t_ref, w3t_ref, mask_ref, scale_ref, bias_ref, out_ref):
    x = x_ref[0]                                                   # (C, HW) f32, HW on lanes

    # All S 1x1 convs in one matmul: (S*Cout, C) @ (C, HW) -> (S*Cout, HW)
    z = jnp.dot(w1t_ref[...], x, preferred_element_type=jnp.float32)

    # Pyramid priors: per stage one lane-dense (Cout,HW)@(HW,HW) matmul (pool+upsample fused).
    priors = []
    for s in range(S):                                             # S=4, static unroll
        zs = z[s * OUT_FEATURES:(s + 1) * OUT_FEATURES, :].astype(mT_ref.dtype)
        priors.append(jnp.dot(zs, mT_ref[s], preferred_element_type=jnp.float32))

    # Channel concat [prior_s0..s3, x] kept resident in VMEM/vregs: (C_CAT, HW)
    cat = jnp.concatenate(priors + [x], axis=0)

    # 3x3 conv (padding=1) as 9 lane-rolled taps, accumulated in f32.  The boundary
    # mask is applied AFTER the matmul on the (Cout,HW) result (identical math,
    # 4.5x fewer mask multiplies than masking the (Ccat,HW) activations).
    acc = jnp.zeros((OUT_FEATURES, HW), jnp.float32)
    for k in range(9):                                             # static unroll
        oy, ox = k // 3 - 1, k % 3 - 1
        delta = oy * W + ox                                        # flat shift of the source
        shifted = cat if delta == 0 else pltpu.roll(cat, (-delta) % HW, axis=1)
        tap = jnp.dot(w3t_ref[k], shifted, preferred_element_type=jnp.float32)   # (Cout, HW)
        acc = acc + mask_ref[k] * tap                              # zero out-of-bounds taps
    # TODO(synk): at larger Ccat it is worth stacking the 9 shifted taps and doing a
    #             single (Cout, 9*Ccat)@(9*Ccat, HW) matmul; at Ccat=36 it is a wash.

    # Folded BatchNorm epilogue (per-out-channel scale/bias), lane-dense store.
    out_ref[0] = (acc * scale_ref[...] + bias_ref[...]).astype(out_ref.dtype)
    # TODO(synk): training-mode batch-stat BN and stochastic Dropout2d not implemented
    #             (Dropout2d(0.1) is identity at inference).


# ---------------- wrapper ----------------
def psp_module_pallas(x_nchw, mT_sp, w1t_all, w3t, masks, bn_scale_cf, bn_bias_cf):
    # NCHW -> (N, C, HW): pure reshape, no transpose needed in channels-first layout.
    x = x_nchw.reshape(N, FEATURES, HW)

    out = pl.pallas_call(
        _psp_fused_kernel,
        out_shape=jax.ShapeDtypeStruct((N, OUT_FEATURES, HW), jnp.float32),
        grid=(N,),
        in_specs=[
            pl.BlockSpec((1, FEATURES, HW), lambda n: (n, 0, 0)),             # x (per batch)
            pl.BlockSpec((S, HW, HW), lambda n: (0, 0, 0)),                   # M^T (resident)
            pl.BlockSpec((S * OUT_FEATURES, FEATURES), lambda n: (0, 0)),     # stacked W1^T
            pl.BlockSpec((9, OUT_FEATURES, C_CAT), lambda n: (0, 0, 0)),      # 3x3 taps W^T
            pl.BlockSpec((9, 1, HW), lambda n: (0, 0, 0)),                    # boundary masks
            pl.BlockSpec((OUT_FEATURES, 1), lambda n: (0, 0)),                # BN scale
            pl.BlockSpec((OUT_FEATURES, 1), lambda n: (0, 0)),                # BN bias
        ],
        out_specs=pl.BlockSpec((1, OUT_FEATURES, HW), lambda n: (n, 0, 0)),
        compiler_params=pltpu.CompilerParams(dimension_semantics=("parallel",)),
    )(x, mT_sp, w1t_all, w3t, masks, bn_scale_cf, bn_bias_cf)

    return out.reshape(N, OUT_FEATURES, H, W)        # already NCHW -> free reshape


# ---------------- pure-JAX reference (for sanity check) ----------------
def psp_reference(x_nchw, m_sp, w1_all, w3_hwio, bn_scale_row, bn_bias_row):
    x = jnp.transpose(x_nchw, (0, 2, 3, 1))
    x_flat = x.reshape(N, HW, FEATURES)
    priors = jnp.einsum('spq,nqc,sco->snpo', m_sp, x_flat, w1_all)
    parts = [priors[s].reshape(N, H, W, OUT_FEATURES) for s in range(S)] + [x]
    cat = jnp.concatenate(parts, axis=-1)
    y = jax.lax.conv_general_dilated(cat, w3_hwio, window_strides=(1, 1), padding='SAME',
                                     dimension_numbers=('NHWC', 'HWIO', 'NHWC'))
    y = y * bn_scale_row + bn_bias_row
    return jnp.transpose(y, (0, 3, 1, 2))


if __name__ == "__main__":
    key = jax.random.PRNGKey(0)
    k_x, k_w1, k_w3 = jax.random.split(key, 3)

    # input (PyTorch NCHW convention)
    x_nchw = jax.random.normal(k_x, (N, FEATURES, H, W), dtype=jnp.float32)

    # deterministic synthetic parameters
    m_sp = build_spatial_operators()                                            # (S, HW, HW)
    w1_all = 0.1 * jax.random.normal(k_w1, (S, FEATURES, OUT_FEATURES), jnp.float32)
    w3_hwio = 0.05 * jax.random.normal(k_w3, (3, 3, C_CAT, OUT_FEATURES), jnp.float32)

    # BatchNorm2d (inference: running stats folded into scale/bias)
    gamma = jnp.linspace(0.5, 1.5, OUT_FEATURES, dtype=jnp.float32)
    beta = jnp.linspace(-0.1, 0.1, OUT_FEATURES, dtype=jnp.float32)
    running_mean = jnp.zeros((OUT_FEATURES,), jnp.float32)
    running_var = jnp.ones((OUT_FEATURES,), jnp.float32)
    scale_vec = gamma / jnp.sqrt(running_var + BN_EPS)
    bias_vec = beta - running_mean * scale_vec

    # kernel-layout parameters (channels-first, HW on the lane axis)
    mT_sp = jnp.transpose(m_sp, (0, 2, 1)).astype(jnp.bfloat16)                 # M^T, bf16
    w1t_all = jnp.transpose(w1_all, (0, 2, 1)).reshape(S * OUT_FEATURES, FEATURES)
    w3t = jnp.transpose(w3_hwio.reshape(9, C_CAT, OUT_FEATURES), (0, 2, 1))     # (9, Cout, Ccat)
    masks = build_conv3x3_masks()                                               # (9, 1, HW)
    bn_scale_cf = scale_vec.reshape(OUT_FEATURES, 1)
    bn_bias_cf = bias_vec.reshape(OUT_FEATURES, 1)

    fwd = jax.jit(psp_module_pallas)
    out = jax.block_until_ready(
        fwd(x_nchw, mT_sp, w1t_all, w3t, masks, bn_scale_cf, bn_bias_cf))

    ref = jax.block_until_ready(
        psp_reference(x_nchw, m_sp, w1_all, w3_hwio,
                      scale_vec.reshape(1, OUT_FEATURES), bias_vec.reshape(1, OUT_FEATURES)))

    assert out.shape == (N, OUT_FEATURES, H, W), out.shape
    assert bool(jnp.all(jnp.isfinite(out)))
    assert bool(jnp.allclose(out, ref, rtol=1e-2, atol=1e-2)), "mismatch vs JAX reference"

    print("KERNEL_OK")
</pallas_src>

<mosaic_0001>
module attributes {stable_mosaic.version = 11 : i64} {
  func.func @_psp_fused_kernel(%arg0: i32, %arg1: memref<1x4x256xf32, #tpu.memory_space<vmem>>, %arg2: memref<4x256x256xbf16, #tpu.memory_space<vmem>>, %arg3: memref<32x4xf32, #tpu.memory_space<vmem>>, %arg4: memref<9x8x36xf32, #tpu.memory_space<vmem>>, %arg5: memref<9x1x256xf32, #tpu.memory_space<vmem>>, %arg6: memref<8x1xf32, #tpu.memory_space<vmem>>, %arg7: memref<8x1xf32, #tpu.memory_space<vmem>>, %arg8: memref<1x8x256xf32, #tpu.memory_space<vmem>>) attributes {dimension_semantics = [#tpu.dimension_semantics<parallel>], iteration_bounds = array<i64: 2>, scalar_prefetch = 0 : i64, scratch_operands = 0 : i64, tpu.core_type = #tpu.core_type<tc>, window_params = [{transform_indices = @transform_0, window_bounds = array<i64: 1, 4, 256>}, {pipeline_mode = #tpu.pipeline_mode<synchronous>, transform_indices = @transform_1, window_bounds = array<i64: 4, 256, 256>}, {pipeline_mode = #tpu.pipeline_mode<synchronous>, transform_indices = @transform_2, window_bounds = array<i64: 32, 4>}, {pipeline_mode = #tpu.pipeline_mode<synchronous>, transform_indices = @transform_3, window_bounds = array<i64: 9, 8, 36>}, {pipeline_mode = #tpu.pipeline_mode<synchronous>, transform_indices = @transform_4, window_bounds = array<i64: 9, 1, 256>}, {pipeline_mode = #tpu.pipeline_mode<synchronous>, transform_indices = @transform_5, window_bounds = array<i64: 8, 1>}, {pipeline_mode = #tpu.pipeline_mode<synchronous>, transform_indices = @transform_6, window_bounds = array<i64: 8, 1>}, {transform_indices = @transform_7, window_bounds = array<i64: 1, 8, 256>}]} {
    %c0 = arith.constant 0 : index
    %c0_0 = arith.constant 0 : index
    %c0_1 = arith.constant 0 : index
    %0 = vector.load %arg1[%c0, %c0_0, %c0_1] : memref<1x4x256xf32, #tpu.memory_space<vmem>>, vector<1x4x256xf32>
    %1 = vector.shape_cast %0 : vector<1x4x256xf32> to vector<4x256xf32>
    %c0_2 = arith.constant 0 : index
    %c0_3 = arith.constant 0 : index
    %2 = vector.load %arg3[%c0_2, %c0_3] : memref<32x4xf32, #tpu.memory_space<vmem>>, vector<32x4xf32>
    %cst = arith.constant dense<0.000000e+00> : vector<32x256xf32>
    %3 = tpu.matmul %2, %1, %cst {dimension_numbers = #tpu.dot_dimension_numbers<[1], [0], [0], [1], [0, 0, 1, 1], [], []>} : vector<32x4xf32>, vector<4x256xf32>, vector<32x256xf32> -> vector<32x256xf32>
    %4 = vector.extract_strided_slice %3 {offsets = [0, 0], sizes = [8, 256], strides = [1, 1]} : vector<32x256xf32> to vector<8x256xf32>
    %5 = arith.truncf %4 : vector<8x256xf32> to vector<8x256xbf16>
    %c0_4 = arith.constant 0 : index
    %c0_5 = arith.constant 0 : index
    %c0_6 = arith.constant 0 : index
    %6 = vector.load %arg2[%c0_4, %c0_5, %c0_6] : memref<4x256x256xbf16, #tpu.memory_space<vmem>>, vector<1x256x256xbf16>
    %7 = vector.shape_cast %6 : vector<1x256x256xbf16> to vector<256x256xbf16>
    %cst_7 = arith.constant dense<0.000000e+00> : vector<8x256xf32>
    %8 = tpu.matmul %5, %7, %cst_7 {dimension_numbers = #tpu.dot_dimension_numbers<[1], [0], [0], [1], [0, 0, 1, 1], [], []>} : vector<8x256xbf16>, vector<256x256xbf16>, vector<8x256xf32> -> vector<8x256xf32>
    %9 = vector.extract_strided_slice %3 {offsets = [8, 0], sizes = [8, 256], strides = [1, 1]} : vector<32x256xf32> to vector<8x256xf32>
    %10 = arith.truncf %9 : vector<8x256xf32> to vector<8x256xbf16>
    %c1 = arith.constant 1 : index
    %c0_8 = arith.constant 0 : index
    %c0_9 = arith.constant 0 : index
    %11 = vector.load %arg2[%c1, %c0_8, %c0_9] : memref<4x256x256xbf16, #tpu.memory_space<vmem>>, vector<1x256x256xbf16>
    %12 = vector.shape_cast %11 : vector<1x256x256xbf16> to vector<256x256xbf16>
    %cst_10 = arith.constant dense<0.000000e+00> : vector<8x256xf32>
    %13 = tpu.matmul %10, %12, %cst_10 {dimension_numbers = #tpu.dot_dimension_numbers<[1], [0], [0], [1], [0, 0, 1, 1], [], []>} : vector<8x256xbf16>, vector<256x256xbf16>, vector<8x256xf32> -> vector<8x256xf32>
    %14 = vector.extract_strided_slice %3 {offsets = [16, 0], sizes = [8, 256], strides = [1, 1]} : vector<32x256xf32> to vector<8x256xf32>
    %15 = arith.truncf %14 : vector<8x256xf32> to vector<8x256xbf16>
    %c2 = arith.constant 2 : index
    %c0_11 = arith.constant 0 : index
    %c0_12 = arith.constant 0 : index
    %16 = vector.load %arg2[%c2, %c0_11, %c0_12] : memref<4x256x256xbf16, #tpu.memory_space<vmem>>, vector<1x256x256xbf16>
    %17 = vector.shape_cast %16 : vector<1x256x256xbf16> to vector<256x256xbf16>
    %cst_13 = arith.constant dense<0.000000e+00> : vector<8x256xf32>
    %18 = tpu.matmul %15, %17, %cst_13 {dimension_numbers = #tpu.dot_dimension_numbers<[1], [0], [0], [1], [0, 0, 1, 1], [], []>} : vector<8x256xbf16>, vector<256x256xbf16>, vector<8x256xf32> -> vector<8x256xf32>
    %19 = vector.extract_strided_slice %3 {offsets = [24, 0], sizes = [8, 256], strides = [1, 1]} : vector<32x256xf32> to vector<8x256xf32>
    %20 = arith.truncf %19 : vector<8x256xf32> to vector<8x256xbf16>
    %c3 = arith.constant 3 : index
    %c0_14 = arith.constant 0 : index
    %c0_15 = arith.constant 0 : index
    %21 = vector.load %arg2[%c3, %c0_14, %c0_15] : memref<4x256x256xbf16, #tpu.memory_space<vmem>>, vector<1x256x256xbf16>
    %22 = vector.shape_cast %21 : vector<1x256x256xbf16> to vector<256x256xbf16>
    %cst_16 = arith.constant dense<0.000000e+00> : vector<8x256xf32>
    %23 = tpu.matmul %20, %22, %cst_16 {dimension_numbers = #tpu.dot_dimension_numbers<[1], [0], [0], [1], [0, 0, 1, 1], [], []>} : vector<8x256xbf16>, vector<256x256xbf16>, vector<8x256xf32> -> vector<8x256xf32>
    %24 = tpu.concatenate %8, %13, %18, %23, %1 in 0 : vector<8x256xf32>, vector<8x256xf32>, vector<8x256xf32>, vector<8x256xf32>, vector<4x256xf32> -> vector<36x256xf32>
    %cst_17 = arith.constant 0.000000e+00 : f32
    %25 = vector.broadcast %cst_17 : f32 to vector<8x256xf32>
    %c17_i32 = arith.constant 17 : i32
    %26 = tpu.dynamic_rotate %24 by %c17_i32 dim 1 : vector<36x256xf32>, i32 -> vector<36x256xf32>
    %c0_18 = arith.constant 0 : index
    %c0_19 = arith.constant 0 : index
    %c0_20 = arith.constant 0 : index
    %27 = vector.load %arg4[%c0_18, %c0_19, %c0_20] : memref<9x8x36xf32, #tpu.memory_space<vmem>>, vector<1x8x36xf32>
    %28 = vector.shape_cast %27 : vector<1x8x36xf32> to vector<8x36xf32>
    %cst_21 = arith.constant dense<0.000000e+00> : vector<8x256xf32>
    %29 = tpu.matmul %28, %26, %cst_21 {dimension_numbers = #tpu.dot_dimension_numbers<[1], [0], [0], [1], [0, 0, 1, 1], [], []>} : vector<8x36xf32>, vector<36x256xf32>, vector<8x256xf32> -> vector<8x256xf32>
    %c0_22 = arith.constant 0 : index
    %c0_23 = arith.constant 0 : index
    %c0_24 = arith.constant 0 : index
    %30 = vector.load %arg5[%c0_22, %c0_23, %c0_24] : memref<9x1x256xf32, #tpu.memory_space<vmem>>, vector<1x1x256xf32>
    %31 = vector.shape_cast %30 : vector<1x1x256xf32> to vector<1x256xf32>
    %32 = vector.broadcast %31 : vector<1x256xf32> to vector<8x256xf32>
    %33 = arith.mulf %32, %29 : vector<8x256xf32>
    %34 = arith.addf %25, %33 : vector<8x256xf32>
    %c16_i32 = arith.constant 16 : i32
    %35 = tpu.dynamic_rotate %24 by %c16_i32 dim 1 : vector<36x256xf32>, i32 -> vector<36x256xf32>
    %c1_25 = arith.constant 1 : index
    %c0_26 = arith.constant 0 : index
    %c0_27 = arith.constant 0 : index
    %36 = vector.load %arg4[%c1_25, %c0_26, %c0_27] : memref<9x8x36xf32, #tpu.memory_space<vmem>>, vector<1x8x36xf32>
    %37 = vector.shape_cast %36 : vector<1x8x36xf32> to vector<8x36xf32>
    %cst_28 = arith.constant dense<0.000000e+00> : vector<8x256xf32>
    %38 = tpu.matmul %37, %35, %cst_28 {dimension_numbers = #tpu.dot_dimension_numbers<[1], [0], [0], [1], [0, 0, 1, 1], [], []>} : vector<8x36xf32>, vector<36x256xf32>, vector<8x256xf32> -> vector<8x256xf32>
    %c1_29 = arith.constant 1 : index
    %c0_30 = arith.constant 0 : index
    %c0_31 = arith.constant 0 : index
    %39 = vector.load %arg5[%c1_29, %c0_30, %c0_31] : memref<9x1x256xf32, #tpu.memory_space<vmem>>, vector<1x1x256xf32>
    %40 = vector.shape_cast %39 : vector<1x1x256xf32> to vector<1x256xf32>
    %41 = vector.broadcast %40 : vector<1x256xf32> to vector<8x256xf32>
    %42 = arith.mulf %41, %38 : vector<8x256xf32>
    %43 = arith.addf %34, %42 : vector<8x256xf32>
    %c15_i32 = arith.constant 15 : i32
    %44 = tpu.dynamic_rotate %24 by %c15_i32 dim 1 : vector<36x256xf32>, i32 -> vector<36x256xf32>
    %c2_32 = arith.constant 2 : index
    %c0_33 = arith.constant 0 : index
    %c0_34 = arith.constant 0 : index
    %45 = vector.load %arg4[%c2_32, %c0_33, %c0_34] : memref<9x8x36xf32, #tpu.memory_space<vmem>>, vector<1x8x36xf32>
    %46 = vector.shape_cast %45 : vector<1x8x36xf32> to vector<8x36xf32>
    %cst_35 = arith.constant dense<0.000000e+00> : vector<8x256xf32>
    %47 = tpu.matmul %46, %44, %cst_35 {dimension_numbers = #tpu.dot_dimension_numbers<[1], [0], [0], [1], [0, 0, 1, 1], [], []>} : vector<8x36xf32>, vector<36x256xf32>, vector<8x256xf32> -> vector<8x256xf32>
    %c2_36 = arith.constant 2 : index
    %c0_37 = arith.constant 0 : index
    %c0_38 = arith.constant 0 : index
    %48 = vector.load %arg5[%c2_36, %c0_37, %c0_38] : memref<9x1x256xf32, #tpu.memory_space<vmem>>, vector<1x1x256xf32>
    %49 = vector.shape_cast %48 : vector<1x1x256xf32> to vector<1x256xf32>
    %50 = vector.broadcast %49 : vector<1x256xf32> to vector<8x256xf32>
    %51 = arith.mulf %50, %47 : vector<8x256xf32>
    %52 = arith.addf %43, %51 : vector<8x256xf32>
    %c1_i32 = arith.constant 1 : i32
    %53 = tpu.dynamic_rotate %24 by %c1_i32 dim 1 : vector<36x256xf32>, i32 -> vector<36x256xf32>
    %c3_39 = arith.constant 3 : index
    %c0_40 = arith.constant 0 : index
    %c0_41 = arith.constant 0 : index
    %54 = vector.load %arg4[%c3_39, %c0_40, %c0_41] : memref<9x8x36xf32, #tpu.memory_space<vmem>>, vector<1x8x36xf32>
    %55 = vector.shape_cast %54 : vector<1x8x36xf32> to vector<8x36xf32>
    %cst_42 = arith.constant dense<0.000000e+00> : vector<8x256xf32>
    %56 = tpu.matmul %55, %53, %cst_42 {dimension_numbers = #tpu.dot_dimension_numbers<[1], [0], [0], [1], [0, 0, 1, 1], [], []>} : vector<8x36xf32>, vector<36x256xf32>, vector<8x256xf32> -> vector<8x256xf32>
    %c3_43 = arith.constant 3 : index
    %c0_44 = arith.constant 0 : index
    %c0_45 = arith.constant 0 : index
    %57 = vector.load %arg5[%c3_43, %c0_44, %c0_45] : memref<9x1x256xf32, #tpu.memory_space<vmem>>, vector<1x1x256xf32>
    %58 = vector.shape_cast %57 : vector<1x1x256xf32> to vector<1x256xf32>
    %59 = vector.broadcast %58 : vector<1x256xf32> to vector<8x256xf32>
    %60 = arith.mulf %59, %56 : vector<8x256xf32>
    %61 = arith.addf %52, %60 : vector<8x256xf32>
    %c4 = arith.constant 4 : index
    %c0_46 = arith.constant 0 : index
    %c0_47 = arith.constant 0 : index
    %62 = vector.load %arg4[%c4, %c0_46, %c0_47] : memref<9x8x36xf32, #tpu.memory_space<vmem>>, vector<1x8x36xf32>
    %63 = vector.shape_cast %62 : vector<1x8x36xf32> to vector<8x36xf32>
    %cst_48 = arith.constant dense<0.000000e+00> : vector<8x256xf32>
    %64 = tpu.matmul %63, %24, %cst_48 {dimension_numbers = #tpu.dot_dimension_numbers<[1], [0], [0], [1], [0, 0, 1, 1], [], []>} : vector<8x36xf32>, vector<36x256xf32>, vector<8x256xf32> -> vector<8x256xf32>
    %c4_49 = arith.constant 4 : index
    %c0_50 = arith.constant 0 : index
    %c0_51 = arith.constant 0 : index
    %65 = vector.load %arg5[%c4_49, %c0_50, %c0_51] : memref<9x1x256xf32, #tpu.memory_space<vmem>>, vector<1x1x256xf32>
    %66 = vector.shape_cast %65 : vector<1x1x256xf32> to vector<1x256xf32>
    %67 = vector.broadcast %66 : vector<1x256xf32> to vector<8x256xf32>
    %68 = arith.mulf %67, %64 : vector<8x256xf32>
    %69 = arith.addf %61, %68 : vector<8x256xf32>
    %c255_i32 = arith.constant 255 : i32
    %70 = tpu.dynamic_rotate %24 by %c255_i32 dim 1 : vector<36x256xf32>, i32 -> vector<36x256xf32>
    %c5 = arith.constant 5 : index
    %c0_52 = arith.constant 0 : index
    %c0_53 = arith.constant 0 : index
    %71 = vector.load %arg4[%c5, %c0_52, %c0_53] : memref<9x8x36xf32, #tpu.memory_space<vmem>>, vector<1x8x36xf32>
    %72 = vector.shape_cast %71 : vector<1x8x36xf32> to vector<8x36xf32>
    %cst_54 = arith.constant dense<0.000000e+00> : vector<8x256xf32>
    %73 = tpu.matmul %72, %70, %cst_54 {dimension_numbers = #tpu.dot_dimension_numbers<[1], [0], [0], [1], [0, 0, 1, 1], [], []>} : vector<8x36xf32>, vector<36x256xf32>, vector<8x256xf32> -> vector<8x256xf32>
    %c5_55 = arith.constant 5 : index
    %c0_56 = arith.constant 0 : index
    %c0_57 = arith.constant 0 : index
    %74 = vector.load %arg5[%c5_55, %c0_56, %c0_57] : memref<9x1x256xf32, #tpu.memory_space<vmem>>, vector<1x1x256xf32>
    %75 = vector.shape_cast %74 : vector<1x1x256xf32> to vector<1x256xf32>
    %76 = vector.broadcast %75 : vector<1x256xf32> to vector<8x256xf32>
    %77 = arith.mulf %76, %73 : vector<8x256xf32>
    %78 = arith.addf %69, %77 : vector<8x256xf32>
    %c241_i32 = arith.constant 241 : i32
    %79 = tpu.dynamic_rotate %24 by %c241_i32 dim 1 : vector<36x256xf32>, i32 -> vector<36x256xf32>
    %c6 = arith.constant 6 : index
    %c0_58 = arith.constant 0 : index
    %c0_59 = arith.constant 0 : index
    %80 = vector.load %arg4[%c6, %c0_58, %c0_59] : memref<9x8x36xf32, #tpu.memory_space<vmem>>, vector<1x8x36xf32>
    %81 = vector.shape_cast %80 : vector<1x8x36xf32> to vector<8x36xf32>
    %cst_60 = arith.constant dense<0.000000e+00> : vector<8x256xf32>
    %82 = tpu.matmul %81, %79, %cst_60 {dimension_numbers = #tpu.dot_dimension_numbers<[1], [0], [0], [1], [0, 0, 1, 1], [], []>} : vector<8x36xf32>, vector<36x256xf32>, vector<8x256xf32> -> vector<8x256xf32>
    %c6_61 = arith.constant 6 : index
    %c0_62 = arith.constant 0 : index
    %c0_63 = arith.constant 0 : index
    %83 = vector.load %arg5[%c6_61, %c0_62, %c0_63] : memref<9x1x256xf32, #tpu.memory_space<vmem>>, vector<1x1x256xf32>
    %84 = vector.shape_cast %83 : vector<1x1x256xf32> to vector<1x256xf32>
    %85 = vector.broadcast %84 : vector<1x256xf32> to vector<8x256xf32>
    %86 = arith.mulf %85, %82 : vector<8x256xf32>
    %87 = arith.addf %78, %86 : vector<8x256xf32>
    %c240_i32 = arith.constant 240 : i32
    %88 = tpu.dynamic_rotate %24 by %c240_i32 dim 1 : vector<36x256xf32>, i32 -> vector<36x256xf32>
    %c7 = arith.constant 7 : index
    %c0_64 = arith.constant 0 : index
    %c0_65 = arith.constant 0 : index
    %89 = vector.load %arg4[%c7, %c0_64, %c0_65] : memref<9x8x36xf32, #tpu.memory_space<vmem>>, vector<1x8x36xf32>
    %90 = vector.shape_cast %89 : vector<1x8x36xf32> to vector<8x36xf32>
    %cst_66 = arith.constant dense<0.000000e+00> : vector<8x256xf32>
    %91 = tpu.matmul %90, %88, %cst_66 {dimension_numbers = #tpu.dot_dimension_numbers<[1], [0], [0], [1], [0, 0, 1, 1], [], []>} : vector<8x36xf32>, vector<36x256xf32>, vector<8x256xf32> -> vector<8x256xf32>
    %c7_67 = arith.constant 7 : index
    %c0_68 = arith.constant 0 : index
    %c0_69 = arith.constant 0 : index
    %92 = vector.load %arg5[%c7_67, %c0_68, %c0_69] : memref<9x1x256xf32, #tpu.memory_space<vmem>>, vector<1x1x256xf32>
    %93 = vector.shape_cast %92 : vector<1x1x256xf32> to vector<1x256xf32>
    %94 = vector.broadcast %93 : vector<1x256xf32> to vector<8x256xf32>
    %95 = arith.mulf %94, %91 : vector<8x256xf32>
    %96 = arith.addf %87, %95 : vector<8x256xf32>
    %c239_i32 = arith.constant 239 : i32
    %97 = tpu.dynamic_rotate %24 by %c239_i32 dim 1 : vector<36x256xf32>, i32 -> vector<36x256xf32>
    %c8 = arith.constant 8 : index
    %c0_70 = arith.constant 0 : index
    %c0_71 = arith.constant 0 : index
    %98 = vector.load %arg4[%c8, %c0_70, %c0_71] : memref<9x8x36xf32, #tpu.memory_space<vmem>>, vector<1x8x36xf32>
    %99 = vector.shape_cast %98 : vector<1x8x36xf32> to vector<8x36xf32>
    %cst_72 = arith.constant dense<0.000000e+00> : vector<8x256xf32>
    %100 = tpu.matmul %99, %97, %cst_72 {dimension_numbers = #tpu.dot_dimension_numbers<[1], [0], [0], [1], [0, 0, 1, 1], [], []>} : vector<8x36xf32>, vector<36x256xf32>, vector<8x256xf32> -> vector<8x256xf32>
    %c8_73 = arith.constant 8 : index
    %c0_74 = arith.constant 0 : index
    %c0_75 = arith.constant 0 : index
    %101 = vector.load %arg5[%c8_73, %c0_74, %c0_75] : memref<9x1x256xf32, #tpu.memory_space<vmem>>, vector<1x1x256xf32>
    %102 = vector.shape_cast %101 : vector<1x1x256xf32> to vector<1x256xf32>
    %103 = vector.broadcast %102 : vector<1x256xf32> to vector<8x256xf32>
    %104 = arith.mulf %103, %100 : vector<8x256xf32>
    %105 = arith.addf %96, %104 : vector<8x256xf32>
    %c0_76 = arith.constant 0 : index
    %c0_77 = arith.constant 0 : index
    %106 = vector.load %arg6[%c0_76, %c0_77] : memref<8x1xf32, #tpu.memory_space<vmem>>, vector<8x1xf32>
    %107 = vector.broadcast %106 : vector<8x1xf32> to vector<8x256xf32>
    %108 = arith.mulf %105, %107 : vector<8x256xf32>
    %c0_78 = arith.constant 0 : index
    %c0_79 = arith.constant 0 : index
    %109 = vector.load %arg7[%c0_78, %c0_79] : memref<8x1xf32, #tpu.memory_space<vmem>>, vector<8x1xf32>
    %110 = vector.broadcast %109 : vector<8x1xf32> to vector<8x256xf32>
    %111 = arith.addf %108, %110 : vector<8x256xf32>
    %c0_80 = arith.constant 0 : index
    %c0_81 = arith.constant 0 : index
    %c0_82 = arith.constant 0 : index
    %112 = vector.load %arg8[%c0_80, %c0_81, %c0_82] : memref<1x8x256xf32, #tpu.memory_space<vmem>>, vector<1x8x256xf32>
    %113 = vector.shape_cast %112 : vector<1x8x256xf32> to vector<8x256xf32>
    %114 = vector.shape_cast %111 : vector<8x256xf32> to vector<1x8x256xf32>
    tpu.vector_store %arg8[%c0_80, %c0_81, %c0_82], %114 {strides = array<i32>} : memref<1x8x256xf32, #tpu.memory_space<vmem>>, vector<1x8x256xf32>,
    return
  }
  func.func @transform_0(%arg0: i32) -> (i32, i32, i32) {
    %c0_i32 = arith.constant 0 : i32
    %c0_i32_0 = arith.constant 0 : i32
    %c0_i32_1 = arith.constant 0 : i32
    return %arg0, %c0_i32, %c0_i32_0 : i32, i32, i32
  }
  func.func @transform_1(%arg0: i32) -> (i32, i32, i32) {
    %c0_i32 = arith.constant 0 : i32
    %c0_i32_0 = arith.constant 0 : i32
    %c0_i32_1 = arith.constant 0 : i32
    %c0_i32_2 = arith.constant 0 : i32
    return %c0_i32, %c0_i32_0, %c0_i32_1 : i32, i32, i32
  }
  func.func @transform_2(%arg0: i32) -> (i32, i32) {
    %c0_i32 = arith.constant 0 : i32
    %c0_i32_0 = arith.constant 0 : i32
    %c0_i32_1 = arith.constant 0 : i32
    return %c0_i32, %c0_i32_0 : i32, i32
  }
  func.func @transform_3(%arg0: i32) -> (i32, i32, i32) {
    %c0_i32 = arith.constant 0 : i32
    %c0_i32_0 = arith.constant 0 : i32
    %c0_i32_1 = arith.constant 0 : i32
    %c0_i32_2 = arith.constant 0 : i32
    return %c0_i32, %c0_i32_0, %c0_i32_1 : i32, i32, i32
  }
  func.func @transform_4(%arg0: i32) -> (i32, i32, i32) {
    %c0_i32 = arith.constant 0 : i32
    %c0_i32_0 = arith.constant 0 : i32
    %c0_i32_1 = arith.constant 0 : i32
    %c0_i32_2 = arith.constant 0 : i32
    return %c0_i32, %c0_i32_0, %c0_i32_1 : i32, i32, i32
  }
  func.func @transform_5(%arg0: i32) -> (i32, i32) {
    %c0_i32 = arith.constant 0 : i32
    %c0_i32_0 = arith.constant 0 : i32
    %c0_i32_1 = arith.constant 0 : i32
    return %c0_i32, %c0_i32_0 : i32, i32
  }
  func.func @transform_6(%arg0: i32) -> (i32, i32) {
    %c0_i32 = arith.constant 0 : i32
    %c0_i32_0 = arith.constant 0 : i32
    %c0_i32_1 = arith.constant 0 : i32
    return %c0_i32, %c0_i32_0 : i32, i32
  }
  func.func @transform_7(%arg0: i32) -> (i32, i32, i32) {
    %c0_i32 = arith.constant 0 : i32
    %c0_i32_0 = arith.constant 0 : i32
    %c0_i32_1 = arith.constant 0 : i32
    return %arg0, %c0_i32, %c0_i32_0 : i32, i32, i32
  }
}

</mosaic_0001>

<llo_original>
// kernel: psp_module_pallas.1
$region0: #{psp_module_pallas.1}
  #allocation0 [shape = 'u32[]', space=smem, size = 0x4, offset = 0x4, fixed_abs, tag = 'smem constant byte address 0x4 - core index']
  #allocation1 [shape = 'u32[144,128]{1,0:T(1,128)}', space=vmem, size = 0x12000, scoped, tag = 'internal scratch']
  %s0 = inlined_call_operand.vmem [shape: f32[2,4,256], index: 0, kind: input, shape index: {}]
  %s1 = inlined_call_operand.hbm [shape: bf16[4,256,256], index: 1, kind: input, shape index: {}]
  %s2 = inlined_call_operand.vmem [shape: f32[32,4], index: 2, kind: input, shape index: {}]
  %s3 = inlined_call_operand.vmem [shape: f32[9,8,36], index: 3, kind: input, shape index: {}]
  %s4 = inlined_call_operand.vmem [shape: f32[9,1,256], index: 4, kind: input, shape index: {}]
  %s5 = inlined_call_operand.vmem [shape: f32[8,1], index: 5, kind: input, shape index: {}]
  %s6 = inlined_call_operand.vmem [shape: f32[8,1], index: 6, kind: input, shape index: {}]
  %s7 = inlined_call_operand.vmem [shape: f32[2,8,256], index: 7, kind: output, shape index: {}]
  %s8 = sld [smem:[#allocation0]]
  $region65: #{psp_module_pallas.1} parent=0
    _
  %s10 = ssub.s32 1, %s8
  %s11 = scalar_select 0, %s10, %s8
  $region1: #{psp_module_pallas.1} parent=0
    #allocation2 [shape = 'u8[524288]{0}', space=vmem, size = 0x80000, scoped, tag = 'input window, operand 1, single buffered']
    #allocation3 [shape = 's32[2]{0}', space=sflag, size = 0x8, scoped, tag = 'scoped memory for psp_module_pallas.1']
    %12 = vsyncpa [#allocation3], 0
    loop: start=0, step=1, limit=4
    $region2: #{psp_module_pallas.1} parent=1 // loop_pre_header
      _
    $region3: #{psp_module_pallas.1} parent=1 // loop_header
      %s14 = sphi 0, %s18
      %p15 = scmp.ge.s32.totalorder %s14, 4
      %s24 = sphi 0, %s26
      %s27 = sphi 0, %s24
      %s28 = sphi 0, %s27
      %s44 = sphi 0, %s28
      %s48 = sphi 0, %s48
      %s50 = sphi 0, %s48
      %s51 = sphi 0, %s50
      %s65 = sphi 0, %s51
      %s69 = sphi 0, %s69
      %s71 = sphi 0, %s69
      %s72 = sphi 0, %s71
      %s86 = sphi 0, %s72
      %s90 = sphi 0, %s90
      %s92 = sphi 0, %s90
      %s93 = sphi 0, %s92
      %s107 = sphi 0, %s93
      %s111 = sphi 0, %s111
      %s113 = sphi 0, %s111
      %s114 = sphi 0, %s113
      %s128 = sphi 0, %s114
      %s132 = sphi 0, %s132
      %s134 = sphi 0, %s132
      %s135 = sphi 0, %s134
      %s149 = sphi 0, %s135
      %s153 = sphi 0, %s153
      %s155 = sphi 0, %s153
      %s156 = sphi 0, %s155
      %s170 = sphi 0, %s156
      %s176 = sphi 0, %s178
      %s179 = sphi 0, %s176
      %s180 = sphi 0, %s179
      %s196 = sphi 0, %s180
    $region4: #{psp_module_pallas.1} parent=1 // loop_header_branch
      %17 = sbr.rel (%p15) target = $region8
    $region5: #{psp_module_pallas.1} parent=1 // loop_body
      %s19 = ssub.s32 %s14, 1
      %s20 = ssub.s32 %s14, 2
      %s21 = sadd.s32 %s14, 1
      %s22 = ssub.s32 %s14, %s21
      %p23 = scmp.eq.s32.totalorder %s22, 0
      %s25 = sadd.s32 %s24, 1
      %s26 = scalar_select %p23, %s24, %s25
      %p29 = pneg %p23
      %p30 = scmp.eq.s32.totalorder %s14, 1
      %p31 = por %p29, %p30
      %p32 = scmp.ne.s32.totalorder %s24, %s27
      %p33 = scmp.eq.s32.totalorder %s14, 0
      %p34 = por %p32, %p33
      %p35 = scmp.ne.s32.totalorder %s24, %s27
      %p36 = scmp.eq.s32.totalorder %s19, 1
      %p37 = por %p35, %p36
      %p38 = scmp.ne.s32.totalorder %s27, %s28
      %p39 = scmp.eq.s32.totalorder %s19, 0
      %p40 = por %p38, %p39
      %p41 = scmp.ne.s32.totalorder %s27, %s28
      %p42 = scmp.eq.s32.totalorder %s20, 1
      %p43 = por %p41, %p42
      %p45 = scmp.ne.s32.totalorder %s28, %s44
      %p46 = scmp.eq.s32.totalorder %s20, 0
      %p47 = por %p45, %p46
      %s49 = sadd.s32 %s48, 1
      %p52 = scmp.eq.s32.totalorder %s14, 1
      %p53 = scmp.ne.s32.totalorder %s48, %s50
      %p54 = scmp.eq.s32.totalorder %s14, 0
      %p55 = por %p53, %p54
      %p56 = scmp.ne.s32.totalorder %s48, %s50
      %p57 = scmp.eq.s32.totalorder %s19, 1
      %p58 = por %p56, %p57
      %p59 = scmp.ne.s32.totalorder %s50, %s51
      %p60 = scmp.eq.s32.totalorder %s19, 0
      %p61 = por %p59, %p60
      %p62 = scmp.ne.s32.totalorder %s50, %s51
      %p63 = scmp.eq.s32.totalorder %s20, 1
      %p64 = por %p62, %p63
      %p66 = scmp.ne.s32.totalorder %s51, %s65
      %p67 = scmp.eq.s32.totalorder %s20, 0
      %p68 = por %p66, %p67
      %s70 = sadd.s32 %s69, 1
      %p73 = scmp.eq.s32.totalorder %s14, 1
      %p74 = scmp.ne.s32.totalorder %s69, %s71
      %p75 = scmp.eq.s32.totalorder %s14, 0
      %p76 = por %p74, %p75
      %p77 = scmp.ne.s32.totalorder %s69, %s71
      %p78 = scmp.eq.s32.totalorder %s19, 1
      %p79 = por %p77, %p78
      %p80 = scmp.ne.s32.totalorder %s71, %s72
      %p81 = scmp.eq.s32.totalorder %s19, 0
      %p82 = por %p80, %p81
      %p83 = scmp.ne.s32.totalorder %s71, %s72
      %p84 = scmp.eq.s32.totalorder %s20, 1
      %p85 = por %p83, %p84
      %p87 = scmp.ne.s32.totalorder %s72, %s86
      %p88 = scmp.eq.s32.totalorder %s20, 0
      %p89 = por %p87, %p88
      %s91 = sadd.s32 %s90, 1
      %p94 = scmp.eq.s32.totalorder %s14, 1
      %p95 = scmp.ne.s32.totalorder %s90, %s92
      %p96 = scmp.eq.s32.totalorder %s14, 0
      %p97 = por %p95, %p96
      %p98 = scmp.ne.s32.totalorder %s90, %s92
      %p99 = scmp.eq.s32.totalorder %s19, 1
      %p100 = por %p98, %p99
      %p101 = scmp.ne.s32.totalorder %s92, %s93
      %p102 = scmp.eq.s32.totalorder %s19, 0
      %p103 = por %p101, %p102
      %p104 = scmp.ne.s32.totalorder %s92, %s93
      %p105 = scmp.eq.s32.totalorder %s20, 1
      %p106 = por %p104, %p105
      %p108 = scmp.ne.s32.totalorder %s93, %s107
      %p109 = scmp.eq.s32.totalorder %s20, 0
      %p110 = por %p108, %p109
      %s112 = sadd.s32 %s111, 1
      %p115 = scmp.eq.s32.totalorder %s14, 1
      %p116 = scmp.ne.s32.totalorder %s111, %s113
      %p117 = scmp.eq.s32.totalorder %s14, 0
      %p118 = por %p116, %p117
      %p119 = scmp.ne.s32.totalorder %s111, %s113
      %p120 = scmp.eq.s32.totalorder %s19, 1
      %p121 = por %p119, %p120
      %p122 = scmp.ne.s32.totalorder %s113, %s114
      %p123 = scmp.eq.s32.totalorder %s19, 0
      %p124 = por %p122, %p123
      %p125 = scmp.ne.s32.totalorder %s113, %s114
      %p126 = scmp.eq.s32.totalorder %s20, 1
      %p127 = por %p125, %p126
      %p129 = scmp.ne.s32.totalorder %s114, %s128
      %p130 = scmp.eq.s32.totalorder %s20, 0
      %p131 = por %p129, %p130
      %s133 = sadd.s32 %s132, 1
      %p136 = scmp.eq.s32.totalorder %s14, 1
      %p137 = scmp.ne.s32.totalorder %s132, %s134
      %p138 = scmp.eq.s32.totalorder %s14, 0
      %p139 = por %p137, %p138
      %p140 = scmp.ne.s32.totalorder %s132, %s134
      %p141 = scmp.eq.s32.totalorder %s19, 1
      %p142 = por %p140, %p141
      %p143 = scmp.ne.s32.totalorder %s134, %s135
      %p144 = scmp.eq.s32.totalorder %s19, 0
      %p145 = por %p143, %p144
      %p146 = scmp.ne.s32.totalorder %s134, %s135
      %p147 = scmp.eq.s32.totalorder %s20, 1
      %p148 = por %p146, %p147
      %p150 = scmp.ne.s32.totalorder %s135, %s149
      %p151 = scmp.eq.s32.totalorder %s20, 0
      %p152 = por %p150, %p151
      %s154 = sadd.s32 %s153, 1
      %p157 = scmp.eq.s32.totalorder %s14, 1
      %p158 = scmp.ne.s32.totalorder %s153, %s155
      %p159 = scmp.eq.s32.totalorder %s14, 0
      %p160 = por %p158, %p159
      %p161 = scmp.ne.s32.totalorder %s153, %s155
      %p162 = scmp.eq.s32.totalorder %s19, 1
      %p163 = por %p161, %p162
      %p164 = scmp.ne.s32.totalorder %s155, %s156
      %p165 = scmp.eq.s32.totalorder %s19, 0
      %p166 = por %p164, %p165
      %p167 = scmp.ne.s32.totalorder %s155, %s156
      %p168 = scmp.eq.s32.totalorder %s20, 1
      %p169 = por %p167, %p168
      %p171 = scmp.ne.s32.totalorder %s156, %s170
      %p172 = scmp.eq.s32.totalorder %s20, 0
      %p173 = por %p171, %p172
      %s174 = ssub.s32 %s14, %s21
      %p175 = scmp.eq.s32.totalorder %s174, 0
      %s177 = sadd.s32 %s176, 1
      %s178 = scalar_select %p175, %s176, %s177
      %p181 = pneg %p175
      %p182 = scmp.eq.s32.totalorder %s14, 1
      %p183 = por %p181, %p182
      %p184 = scmp.ne.s32.totalorder %s176, %s179
      %p185 = scmp.eq.s32.totalorder %s14, 0
      %p186 = por %p184, %p185
      %p187 = scmp.ne.s32.totalorder %s176, %s179
      %p188 = scmp.eq.s32.totalorder %s19, 1
      %p189 = por %p187, %p188
      %p190 = scmp.ne.s32.totalorder %s179, %s180
      %p191 = scmp.eq.s32.totalorder %s19, 0
      %p192 = por %p190, %p191
      %p193 = scmp.ne.s32.totalorder %s179, %s180
      %p194 = scmp.eq.s32.totalorder %s20, 1
      %p195 = por %p193, %p194
      %p197 = scmp.ne.s32.totalorder %s180, %s196
      %p198 = scmp.eq.s32.totalorder %s20, 0
      %p199 = por %p197, %p198
      %p200 = scmp.le.s32.totalorder 1, %s14
      %p201 = scmp.lt.s32.totalorder %s14, 3
      %p202 = pnand %p200, %p201
      %p203 = pneg %p202
      // Predicated region
      $region9: #{psp_module_pallas.1} parent=5 // pred_check
        _
      $region10: #{psp_module_pallas.1} parent=5 // pred_check_branch
        %205 = sbr.rel (%p202) target = $region12
      $region11: #{psp_module_pallas.1} parent=5 // pred_region
        %s206 = ssub.s32 %s14, 1
        // Predicated region
        $region13: #{psp_module_pallas.1} parent=11 // pred_check
          %p207 = pneg %p61
        $region14: #{psp_module_pallas.1} parent=11 // pred_check_branch
          %209 = sbr.rel (%p207) target = $region16
        $region15: #{psp_module_pallas.1} parent=11 // pred_region
          %s211 = ssub.s32 16384, 16384
          %212 = vsyncadd [#allocation3], %s211
          %s213 = sshll.u32 [#allocation2], 4
          %s214 = int_to_ptr.vmem [resolvable:$true] %s213
          %219 = dma.hbm_to_vmem [thread:$0]  %s1, 16384, %s214, [#allocation3], 128, 128, 8
        $region16: #{psp_module_pallas.1} parent=11 // pred_fallthru
          _
        // Predicated region
        $region17: #{psp_module_pallas.1} parent=11 // pred_check
          %p220 = pneg %p82
        $region18: #{psp_module_pallas.1} parent=11 // pred_check_branch
          %222 = sbr.rel (%p220) target = $region20
        $region19: #{psp_module_pallas.1} parent=11 // pred_region
          _
        $region20: #{psp_module_pallas.1} parent=11 // pred_fallthru
          _
        // Predicated region
        $region21: #{psp_module_pallas.1} parent=11 // pred_check
          %p223 = pneg %p103
        $region22: #{psp_module_pallas.1} parent=11 // pred_check_branch
          %225 = sbr.rel (%p223) target = $region24
        $region23: #{psp_module_pallas.1} parent=11 // pred_region
          _
        $region24: #{psp_module_pallas.1} parent=11 // pred_fallthru
          _
        // Predicated region
        $region25: #{psp_module_pallas.1} parent=11 // pred_check
          %p226 = pneg %p124
        $region26: #{psp_module_pallas.1} parent=11 // pred_check_branch
          %228 = sbr.rel (%p226) target = $region28
        $region27: #{psp_module_pallas.1} parent=11 // pred_region
          _
        $region28: #{psp_module_pallas.1} parent=11 // pred_fallthru
          _
        // Predicated region
        $region29: #{psp_module_pallas.1} parent=11 // pred_check
          %p229 = pneg %p145
        $region30: #{psp_module_pallas.1} parent=11 // pred_check_branch
          %231 = sbr.rel (%p229) target = $region32
        $region31: #{psp_module_pallas.1} parent=11 // pred_region
          _
        $region32: #{psp_module_pallas.1} parent=11 // pred_fallthru
          _
        // Predicated region
        $region33: #{psp_module_pallas.1} parent=11 // pred_check
          %p232 = pneg %p166
        $region34: #{psp_module_pallas.1} parent=11 // pred_check_branch
          %234 = sbr.rel (%p232) target = $region36
        $region35: #{psp_module_pallas.1} parent=11 // pred_region
          _
        $region36: #{psp_module_pallas.1} parent=11 // pred_fallthru
          _
      $region12: #{psp_module_pallas.1} parent=5 // pred_fallthru
        _
      %p235 = scmp.lt.s32.totalorder %s14, 2
      // Predicated region
      $region37: #{psp_module_pallas.1} parent=5 // pred_check
        %p236 = pneg %p235
      $region38: #{psp_module_pallas.1} parent=5 // pred_check_branch
        %238 = sbr.rel (%p236) target = $region40
      $region39: #{psp_module_pallas.1} parent=5 // pred_region
        // Predicated region
        $region41: #{psp_module_pallas.1} parent=39 // pred_check
          %p239 = pneg %p34
        $region42: #{psp_module_pallas.1} parent=39 // pred_check_branch
          %241 = sbr.rel (%p239) target = $region44
        $region43: #{psp_module_pallas.1} parent=39 // pred_region
          %p242 = scmp.lt.s32.totalorder %s14, 1
          %s243 = scalar_select %p242, %s14, 1
          %s244 = smul.addr %s243, 2
          %s245 = smul.addr %s244, 4
          %s246 = scalar_lea.vmem %s0, %s245
        $region44: #{psp_module_pallas.1} parent=39 // pred_fallthru
          _
      $region40: #{psp_module_pallas.1} parent=5 // pred_fallthru
        _
      %p247 = scmp.le.s32.totalorder 1, %s14
      %p248 = scmp.lt.s32.totalorder %s14, 3
      %p249 = pnand %p247, %p248
      %p250 = pneg %p249
      // Predicated region
      $region45: #{psp_module_pallas.1} parent=5 // pred_check
        _
      $region46: #{psp_module_pallas.1} parent=5 // pred_check_branch
        %252 = sbr.rel (%p249) target = $region48
      $region47: #{psp_module_pallas.1} parent=5 // pred_region
        %s253 = ssub.s32 %s14, 1
        // Predicated region
        $region49: #{psp_module_pallas.1} parent=47 // pred_check
          %p254 = pneg %p61
        $region50: #{psp_module_pallas.1} parent=47 // pred_check_branch
          %256 = sbr.rel (%p254) target = $region52
        $region51: #{psp_module_pallas.1} parent=47 // pred_region
          %257 = dma.done [#allocation3], 16384
        $region52: #{psp_module_pallas.1} parent=47 // pred_fallthru
          _
        %p258 = scmp.lt.s32.totalorder %s19, 1
        %s259 = scalar_select %p258, %s19, 1
        %s260 = smul.addr %s259, 2
        %s261 = smul.addr %s260, 4
        %s262 = scalar_lea.vmem %s0, %s261
        %p263 = pneg %p40
        %p264 = pneg %p37
        %p265 = pneg %p61
        %p266 = pneg %p58
        %p267 = pneg %p82
        %p268 = pneg %p79
        %p269 = pneg %p103
        %p270 = pneg %p100
        %p271 = pneg %p124
        %p272 = pneg %p121
        %p273 = pneg %p145
        %p274 = pneg %p142
        %p275 = pneg %p166
        %p276 = pneg %p163
        %p277 = pneg %p192
        %p278 = pneg %p189
        %p279 = scmp.lt.s32.totalorder %s19, 1
        %s280 = scalar_select %p279, %s19, 1
        %s281 = smul.addr %s280, 2
        %s282 = smul.addr %s281, 8
        %s283 = scalar_lea.vmem %s7, %s282
        %p284 = scmp.lt.s32.totalorder %s19, 1
        %s285 = scalar_select %p284, %s19, 1
        %s286 = smul.addr %s285, 2
        %s287 = smul.addr %s286, 4
        %s288 = scalar_lea.vmem %s0, %s287
        %p289 = scmp.lt.s32.totalorder %s19, 1
        %s290 = scalar_select %p289, %s19, 1
        %s291 = smul.addr %s290, 2
        %s292 = smul.addr %s291, 8
        %s293 = scalar_lea.vmem %s7, %s292
        %v294 = vld [vmem:[%s288] sm:$0xff]
        %v295 = vld [vmem:[%s2] sm:$0xff]
        %v296 = vld [vmem:[%s2 + $0x8] sm:$0xff]
        %v297 = vld [vmem:[%s2 + $0x10] sm:$0xff]
        %v298 = vld [vmem:[%s2 + $0x18] sm:$0xff]
        %v300 = vcombine.high %v294, %v294
        %vm301 = vcmask 31744
        %v303 = vsel %vm301, %v295, 0
        %v306 = vsel %vm301, %v296, 0
        %v309 = vsel %vm301, %v297, 0
        %v312 = vsel %vm301, %v298, 0
        %vm314 = vcmask 1043456
        %v315 = vsel %vm314, %v294, 0
        %v317 = vsel %vm314, %v300, 0
        %319 = vmatprep.subr.mxu0 %v317
        %320 = vmatpush1.msra.mxu0 %v315
        %321 = vmatprep.subr.mxu0 0.0
        %322 = vmatpush1.msra.mxu0 0.0
        %323 = vmatprep.subr.mxu0 0.0
        %324 = vmatpush1.msra.mxu0 0.0
        %325 = vmatprep.subr.mxu0 0.0
        %326 = vmatpush1.msra.mxu0 0.0
        %327 = vmatprep.subr.mxu0 0.0
        %328 = vmatpush1.msra.mxu0 0.0
        %329 = vmatprep.subr.mxu0 0.0
        %330 = vmatpush1.msra.mxu0 0.0
        %331 = vmatprep.subr.mxu0 0.0
        %332 = vmatpush1.msra.mxu0 0.0
        %333 = vmatprep.subr.mxu0 0.0
        %334 = vmatpush1.msra.mxu0 0.0
        %335 = vmatprep.subr.mxu0 0.0
        %336 = vmatpush1.msra.mxu0 0.0
        %337 = vmatprep.subr.mxu0 0.0
        %338 = vmatpush1.msra.mxu0 0.0
        %339 = vmatprep.subr.mxu0 0.0
        %340 = vmatpush1.msra.mxu0 0.0
        %341 = vmatprep.subr.mxu0 0.0
        %342 = vmatpush1.msra.mxu0 0.0
        %343 = vmatprep.subr.mxu0 0.0
        %344 = vmatpush1.msra.mxu0 0.0
        %345 = vmatprep.subr.mxu0 0.0
        %346 = vmatpush1.msra.mxu0 0.0
        %347 = vmatprep.subr.mxu0 0.0
        %348 = vmatpush1.msra.mxu0 0.0
        %349 = vmatprep.subr.mxu0 0.0
        %350 = vmatpush1.msra.mxu0 0.0
        %351 = vmatprep.subr.mxu0 0.0
        %352 = vmatpush1.msra.mxu0 0.0
        %353 = vmatprep.subr.mxu0 0.0
        %354 = vmatpush1.msra.mxu0 0.0
        %355 = vmatprep.subr.mxu0 0.0
        %356 = vmatpush1.msra.mxu0 0.0
        %357 = vmatprep.subr.mxu0 0.0
        %358 = vmatpush1.msra.mxu0 0.0
        %359 = vmatprep.subr.mxu0 0.0
        %360 = vmatpush1.msra.mxu0 0.0
        %361 = vmatprep.subr.mxu0 0.0
        %362 = vmatpush1.msra.mxu0 0.0
        %363 = vmatprep.subr.mxu0 0.0
        %364 = vmatpush1.msra.mxu0 0.0
        %365 = vmatprep.subr.mxu0 0.0
        %366 = vmatpush1.msra.mxu0 0.0
        %367 = vmatprep.subr.mxu0 0.0
        %368 = vmatpush1.msra.mxu0 0.0
        %369 = vmatprep.subr.mxu0 0.0
        %370 = vmatpush1.msra.mxu0 0.0
        %371 = vmatprep.subr.mxu0 0.0
        %372 = vmatpush1.msra.mxu0 0.0
        %373 = vmatprep.subr.mxu0 0.0
        %374 = vmatpush1.msra.mxu0 0.0
        %375 = vmatprep.subr.mxu0 0.0
        %376 = vmatpush1.msra.mxu0 0.0
        %377 = vmatprep.subr.mxu0 0.0
        %378 = vmatpush1.msra.mxu0 0.0
        %379 = vmatprep.subr.mxu0 0.0
        %380 = vmatpush1.msra.mxu0 0.0
        %381 = vmatprep.subr.mxu0 0.0
        %382 = vmatpush1.msra.mxu0 0.0
        %383 = vmatprep.mubr.f32.mxu0 0.0
        %384 = vmatmul.mubr.f32.gmra.mrb[0].mxu0 %v303
        %v385 = vpop.f32.mrb[0].mxu0
        %v386 = vadd.f32 0.0, %v385
        %v387 = vpop.f32.mrb[0].mxu0
        %v388 = vadd.f32 0.0, %v387
        %389 = vmatprep.mubr.f32.mxu0 0.0
        %390 = vmatmul.mubr.f32.gmra.mrb[0].mxu0 %v306
        %v391 = vpop.f32.mrb[0].mxu0
        %v392 = vadd.f32 0.0, %v391
        %v393 = vpop.f32.mrb[0].mxu0
        %v394 = vadd.f32 0.0, %v393
        %395 = vmatprep.mubr.f32.mxu0 0.0
        %396 = vmatmul.mubr.f32.gmra.mrb[0].mxu0 %v309
        %v397 = vpop.f32.mrb[0].mxu0
        %v398 = vadd.f32 0.0, %v397
        %v399 = vpop.f32.mrb[0].mxu0
        %v400 = vadd.f32 0.0, %v399
        %401 = vmatprep.mubr.f32.mxu0 0.0
        %402 = vmatmul.mubr.f32.gmra.mrb[0].mxu0 %v312
        %v403 = vpop.f32.mrb[0].mxu0
        %v404 = vadd.f32 0.0, %v403
        %v405 = vpop.f32.mrb[0].mxu0
        %v406 = vadd.f32 0.0, %v405
        %407 = vdwg.mxu0
        %v408 = vpack.c.bf16 %v386, %v386
        %v409 = vpack.c.bf16 %v388, %v388
        %v410 = vld [vmem:[#allocation2] sm:$0xff]
        %v411 = vld [vmem:[#allocation2 + $0x8] sm:$0xff]
        %v412 = vld [vmem:[#allocation2 + $0x10] sm:$0xff]
        %v413 = vld [vmem:[#allocation2 + $0x18] sm:$0xff]
        %v414 = vld [vmem:[#allocation2 + $0x20] sm:$0xff]
        %v415 = vld [vmem:[#allocation2 + $0x28] sm:$0xff]
        %v416 = vld [vmem:[#allocation2 + $0x30] sm:$0xff]
        %v417 = vld [vmem:[#allocation2 + $0x38] sm:$0xff]
        %v418 = vld [vmem:[#allocation2 + $0x40] sm:$0xff]
        %v419 = vld [vmem:[#allocation2 + $0x48] sm:$0xff]
        %v420 = vld [vmem:[#allocation2 + $0x50] sm:$0xff]
        %v421 = vld [vmem:[#allocation2 + $0x58] sm:$0xff]
        %v422 = vld [vmem:[#allocation2 + $0x60] sm:$0xff]
        %v423 = vld [vmem:[#allocation2 + $0x68] sm:$0xff]
        %v424 = vld [vmem:[#allocation2 + $0x70] sm:$0xff]
        %v425 = vld [vmem:[#allocation2 + $0x78] sm:$0xff]
        %v426 = vld [vmem:[#allocation2 + $0x80] sm:$0xff]
        %v427 = vld [vmem:[#allocation2 + $0x88] sm:$0xff]
        %v428 = vld [vmem:[#allocation2 + $0x90] sm:$0xff]
        %v429 = vld [vmem:[#allocation2 + $0x98] sm:$0xff]
        %v430 = vld [vmem:[#allocation2 + $0xa0] sm:$0xff]
        %v431 = vld [vmem:[#allocation2 + $0xa8] sm:$0xff]
        %v432 = vld [vmem:[#allocation2 + $0xb0] sm:$0xff]
        %v433 = vld [vmem:[#allocation2 + $0xb8] sm:$0xff]
        %v434 = vld [vmem:[#allocation2 + $0xc0] sm:$0xff]
        %v435 = vld [vmem:[#allocation2 + $0xc8] sm:$0xff]
        %v436 = vld [vmem:[#allocation2 + $0xd0] sm:$0xff]
        %v437 = vld [vmem:[#allocation2 + $0xd8] sm:$0xff]
        %v438 = vld [vmem:[#allocation2 + $0xe0] sm:$0xff]
        %v439 = vld [vmem:[#allocation2 + $0xe8] sm:$0xff]
        %v440 = vld [vmem:[#allocation2 + $0xf0] sm:$0xff]
        %v441 = vld [vmem:[#allocation2 + $0xf8] sm:$0xff]
        %v474 = vunpack.c.l.b16 %v410
        %v475 = vunpack.c.h.b16 %v410
        %v476 = vunpack.c.l.b16 %v411
        %v477 = vunpack.c.h.b16 %v411
        %v478 = vunpack.c.l.b16 %v412
        %v479 = vunpack.c.h.b16 %v412
        %v480 = vunpack.c.l.b16 %v413
        %v481 = vunpack.c.h.b16 %v413
        %v482 = vunpack.c.l.b16 %v414
        %v483 = vunpack.c.h.b16 %v414
        %v484 = vunpack.c.l.b16 %v415
        %v485 = vunpack.c.h.b16 %v415
        %v486 = vunpack.c.l.b16 %v416
        %v487 = vunpack.c.h.b16 %v416
        %v488 = vunpack.c.l.b16 %v417
        %v489 = vunpack.c.h.b16 %v417
        %v490 = vunpack.c.l.b16 %v418
        %v491 = vunpack.c.h.b16 %v418
        %v492 = vunpack.c.l.b16 %v419
        %v493 = vunpack.c.h.b16 %v419
        %v494 = vunpack.c.l.b16 %v420
        %v495 = vunpack.c.h.b16 %v420
        %v496 = vunpack.c.l.b16 %v421
        %v497 = vunpack.c.h.b16 %v421
        %v498 = vunpack.c.l.b16 %v422
        %v499 = vunpack.c.h.b16 %v422
        %v500 = vunpack.c.l.b16 %v423
        %v501 = vunpack.c.h.b16 %v423
        %v502 = vunpack.c.l.b16 %v424
        %v503 = vunpack.c.h.b16 %v424
        %v504 = vunpack.c.l.b16 %v425
        %v505 = vunpack.c.h.b16 %v425
        %v506 = vunpack.c.l.b16 %v426
        %v507 = vunpack.c.h.b16 %v426
        %v508 = vunpack.c.l.b16 %v427
        %v509 = vunpack.c.h.b16 %v427
        %v510 = vunpack.c.l.b16 %v428
        %v511 = vunpack.c.h.b16 %v428
        %v512 = vunpack.c.l.b16 %v429
        %v513 = vunpack.c.h.b16 %v429
        %v514 = vunpack.c.l.b16 %v430
        %v515 = vunpack.c.h.b16 %v430
        %v516 = vunpack.c.l.b16 %v431
        %v517 = vunpack.c.h.b16 %v431
        %v518 = vunpack.c.l.b16 %v432
        %v519 = vunpack.c.h.b16 %v432
        %v520 = vunpack.c.l.b16 %v433
        %v521 = vunpack.c.h.b16 %v433
        %v522 = vunpack.c.l.b16 %v434
        %v523 = vunpack.c.h.b16 %v434
        %v524 = vunpack.c.l.b16 %v435
        %v525 = vunpack.c.h.b16 %v435
        %v526 = vunpack.c.l.b16 %v436
        %v527 = vunpack.c.h.b16 %v436
        %v528 = vunpack.c.l.b16 %v437
        %v529 = vunpack.c.h.b16 %v437
        %v530 = vunpack.c.l.b16 %v438
        %v531 = vunpack.c.h.b16 %v438
        %v532 = vunpack.c.l.b16 %v439
        %v533 = vunpack.c.h.b16 %v439
        %v534 = vunpack.c.l.b16 %v440
        %v535 = vunpack.c.h.b16 %v440
        %v536 = vunpack.c.l.b16 %v441
        %v537 = vunpack.c.h.b16 %v441
        %v538 = vpack.c.b16 %v476, %v474
        %v539 = vpack.c.b16 %v477, %v475
        %v540 = vpack.c.b16 %v480, %v478
        %v541 = vpack.c.b16 %v481, %v479
        %v542 = vpack.c.b16 %v484, %v482
        %v543 = vpack.c.b16 %v485, %v483
        %v544 = vpack.c.b16 %v488, %v486
        %v545 = vpack.c.b16 %v489, %v487
        %v546 = vpack.c.b16 %v492, %v490
        %v547 = vpack.c.b16 %v493, %v491
        %v548 = vpack.c.b16 %v496, %v494
        %v549 = vpack.c.b16 %v497, %v495
        %v550 = vpack.c.b16 %v500, %v498
        %v551 = vpack.c.b16 %v501, %v499
        %v552 = vpack.c.b16 %v504, %v502
        %v553 = vpack.c.b16 %v505, %v503
        %v554 = vpack.c.b16 %v508, %v506
        %v555 = vpack.c.b16 %v509, %v507
        %v556 = vpack.c.b16 %v512, %v510
        %v557 = vpack.c.b16 %v513, %v511
        %v558 = vpack.c.b16 %v516, %v514
        %v559 = vpack.c.b16 %v517, %v515
        %v560 = vpack.c.b16 %v520, %v518
        %v561 = vpack.c.b16 %v521, %v519
        %v562 = vpack.c.b16 %v524, %v522
        %v563 = vpack.c.b16 %v525, %v523
        %v564 = vpack.c.b16 %v528, %v526
        %v565 = vpack.c.b16 %v529, %v527
        %v566 = vpack.c.b16 %v532, %v530
        %v567 = vpack.c.b16 %v533, %v531
        %v568 = vpack.c.b16 %v536, %v534
        %v569 = vpack.c.b16 %v537, %v535
        %602 = vmatprep.subr.bf16.mxu0 %v539
        %603 = vmatpush1.bf16.msra.mxu0 %v538
        %604 = vmatprep.subr.bf16.mxu0 %v541
        %605 = vmatpush1.bf16.msra.mxu0 %v540
        %606 = vmatprep.subr.bf16.mxu0 %v543
        %607 = vmatpush1.bf16.msra.mxu0 %v542
        %608 = vmatprep.subr.bf16.mxu0 %v545
        %609 = vmatpush1.bf16.msra.mxu0 %v544
        %610 = vmatprep.subr.bf16.mxu0 %v547
        %611 = vmatpush1.bf16.msra.mxu0 %v546
        %612 = vmatprep.subr.bf16.mxu0 %v549
        %613 = vmatpush1.bf16.msra.mxu0 %v548
        %614 = vmatprep.subr.bf16.mxu0 %v551
        %615 = vmatpush1.bf16.msra.mxu0 %v550
        %616 = vmatprep.subr.bf16.mxu0 %v553
        %617 = vmatpush1.bf16.msra.mxu0 %v552
        %618 = vmatprep.subr.bf16.mxu0 %v555
        %619 = vmatpush1.bf16.msra.mxu0 %v554
        %620 = vmatprep.subr.bf16.mxu0 %v557
        %621 = vmatpush1.bf16.msra.mxu0 %v556
        %622 = vmatprep.subr.bf16.mxu0 %v559
        %623 = vmatpush1.bf16.msra.mxu0 %v558
        %624 = vmatprep.subr.bf16.mxu0 %v561
        %625 = vmatpush1.bf16.msra.mxu0 %v560
        %626 = vmatprep.subr.bf16.mxu0 %v563
        %627 = vmatpush1.bf16.msra.mxu0 %v562
        %628 = vmatprep.subr.bf16.mxu0 %v565
        %629 = vmatpush1.bf16.msra.mxu0 %v564
        %630 = vmatprep.subr.bf16.mxu0 %v567
        %631 = vmatpush1.bf16.msra.mxu0 %v566
        %632 = vmatprep.subr.bf16.mxu0 %v569
        %633 = vmatpush1.bf16.msra.mxu0 %v568
        %634 = vmatprep.mubr.bf16.mxu0 %v409
        %635 = vmatmul.mubr.bf16.gmra.mrb[0].mxu0 %v408
        %v636 = vpop.f32.mrb[0].mxu0
        %v637 = vadd.f32 0.0, %v636
        %v638 = vpop.f32.mrb[0].mxu0
        %v639 = vadd.f32 0.0, %v638
        %v640 = vpop.f32.mrb[0].mxu0
        %v641 = vpop.f32.mrb[0].mxu0
        %642 = vdwg.mxu0
        %v643 = vpack.c.bf16 %v392, %v392
        %v644 = vpack.c.bf16 %v394, %v394
        %s645 = scalar_lea.vmem [#allocation2], 256
        %v646 = vld [vmem:[%s645] sm:$0xff]
        %v647 = vld [vmem:[%s645 + $0x8] sm:$0xff]
        %v648 = vld [vmem:[%s645 + $0x10] sm:$0xff]
        %v649 = vld [vmem:[%s645 + $0x18] sm:$0xff]
        %v650 = vld [vmem:[%s645 + $0x20] sm:$0xff]
        %v651 = vld [vmem:[%s645 + $0x28] sm:$0xff]
        %v652 = vld [vmem:[%s645 + $0x30] sm:$0xff]
        %v653 = vld [vmem:[%s645 + $0x38] sm:$0xff]
        %v654 = vld [vmem:[%s645 + $0x40] sm:$0xff]
        %v655 = vld [vmem:[%s645 + $0x48] sm:$0xff]
        %v656 = vld [vmem:[%s645 + $0x50] sm:$0xff]
        %v657 = vld [vmem:[%s645 + $0x58] sm:$0xff]
        %v658 = vld [vmem:[%s645 + $0x60] sm:$0xff]
        %v659 = vld [vmem:[%s645 + $0x68] sm:$0xff]
        %v660 = vld [vmem:[%s645 + $0x70] sm:$0xff]
        %v661 = vld [vmem:[%s645 + $0x78] sm:$0xff]
        %v662 = vld [vmem:[%s645 + $0x80] sm:$0xff]
        %v663 = vld [vmem:[%s645 + $0x88] sm:$0xff]
        %v664 = vld [vmem:[%s645 + $0x90] sm:$0xff]
        %v665 = vld [vmem:[%s645 + $0x98] sm:$0xff]
        %v666 = vld [vmem:[%s645 + $0xa0] sm:$0xff]
        %v667 = vld [vmem:[%s645 + $0xa8] sm:$0xff]
        %v668 = vld [vmem:[%s645 + $0xb0] sm:$0xff]
        %v669 = vld [vmem:[%s645 + $0xb8] sm:$0xff]
        %v670 = vld [vmem:[%s645 + $0xc0] sm:$0xff]
        %v671 = vld [vmem:[%s645 + $0xc8] sm:$0xff]
        %v672 = vld [vmem:[%s645 + $0xd0] sm:$0xff]
        %v673 = vld [vmem:[%s645 + $0xd8] sm:$0xff]
        %v674 = vld [vmem:[%s645 + $0xe0] sm:$0xff]
        %v675 = vld [vmem:[%s645 + $0xe8] sm:$0xff]
        %v676 = vld [vmem:[%s645 + $0xf0] sm:$0xff]
        %v677 = vld [vmem:[%s645 + $0xf8] sm:$0xff]
        %v710 = vunpack.c.l.b16 %v646
        %v711 = vunpack.c.h.b16 %v646
        %v712 = vunpack.c.l.b16 %v647
        %v713 = vunpack.c.h.b16 %v647
        %v714 = vunpack.c.l.b16 %v648
        %v715 = vunpack.c.h.b16 %v648
        %v716 = vunpack.c.l.b16 %v649
        %v717 = vunpack.c.h.b16 %v649
        %v718 = vunpack.c.l.b16 %v650
        %v719 = vunpack.c.h.b16 %v650
        %v720 = vunpack.c.l.b16 %v651
        %v721 = vunpack.c.h.b16 %v651
        %v722 = vunpack.c.l.b16 %v652
        %v723 = vunpack.c.h.b16 %v652
        %v724 = vunpack.c.l.b16 %v653
        %v725 = vunpack.c.h.b16 %v653
        %v726 = vunpack.c.l.b16 %v654
        %v727 = vunpack.c.h.b16 %v654
        %v728 = vunpack.c.l.b16 %v655
        %v729 = vunpack.c.h.b16 %v655
        %v730 = vunpack.c.l.b16 %v656
        %v731 = vunpack.c.h.b16 %v656
        %v732 = vunpack.c.l.b16 %v657
        %v733 = vunpack.c.h.b16 %v657
        %v734 = vunpack.c.l.b16 %v658
        %v735 = vunpack.c.h.b16 %v658
        %v736 = vunpack.c.l.b16 %v659
        %v737 = vunpack.c.h.b16 %v659
        %v738 = vunpack.c.l.b16 %v660
        %v739 = vunpack.c.h.b16 %v660
        %v740 = vunpack.c.l.b16 %v661
        %v741 = vunpack.c.h.b16 %v661
        %v742 = vunpack.c.l.b16 %v662
        %v743 = vunpack.c.h.b16 %v662
        %v744 = vunpack.c.l.b16 %v663
        %v745 = vunpack.c.h.b16 %v663
        %v746 = vunpack.c.l.b16 %v664
        %v747 = vunpack.c.h.b16 %v664
        %v748 = vunpack.c.l.b16 %v665
        %v749 = vunpack.c.h.b16 %v665
        %v750 = vunpack.c.l.b16 %v666
        %v751 = vunpack.c.h.b16 %v666
        %v752 = vunpack.c.l.b16 %v667
        %v753 = vunpack.c.h.b16 %v667
        %v754 = vunpack.c.l.b16 %v668
        %v755 = vunpack.c.h.b16 %v668
        %v756 = vunpack.c.l.b16 %v669
        %v757 = vunpack.c.h.b16 %v669
        %v758 = vunpack.c.l.b16 %v670
        %v759 = vunpack.c.h.b16 %v670
        %v760 = vunpack.c.l.b16 %v671
        %v761 = vunpack.c.h.b16 %v671
        %v762 = vunpack.c.l.b16 %v672
        %v763 = vunpack.c.h.b16 %v672
        %v764 = vunpack.c.l.b16 %v673
        %v765 = vunpack.c.h.b16 %v673
        %v766 = vunpack.c.l.b16 %v674
        %v767 = vunpack.c.h.b16 %v674
        %v768 = vunpack.c.l.b16 %v675
        %v769 = vunpack.c.h.b16 %v675
        %v770 = vunpack.c.l.b16 %v676
        %v771 = vunpack.c.h.b16 %v676
        %v772 = vunpack.c.l.b16 %v677
        %v773 = vunpack.c.h.b16 %v677
        %v774 = vpack.c.b16 %v712, %v710
        %v775 = vpack.c.b16 %v713, %v711
        %v776 = vpack.c.b16 %v716, %v714
        %v777 = vpack.c.b16 %v717, %v715
        %v778 = vpack.c.b16 %v720, %v718
        %v779 = vpack.c.b16 %v721, %v719
        %v780 = vpack.c.b16 %v724, %v722
        %v781 = vpack.c.b16 %v725, %v723
        %v782 = vpack.c.b16 %v728, %v726
        %v783 = vpack.c.b16 %v729, %v727
        %v784 = vpack.c.b16 %v732, %v730
        %v785 = vpack.c.b16 %v733, %v731
        %v786 = vpack.c.b16 %v736, %v734
        %v787 = vpack.c.b16 %v737, %v735
        %v788 = vpack.c.b16 %v740, %v738
        %v789 = vpack.c.b16 %v741, %v739
        %v790 = vpack.c.b16 %v744, %v742
        %v791 = vpack.c.b16 %v745, %v743
        %v792 = vpack.c.b16 %v748, %v746
        %v793 = vpack.c.b16 %v749, %v747
        %v794 = vpack.c.b16 %v752, %v750
        %v795 = vpack.c.b16 %v753, %v751
        %v796 = vpack.c.b16 %v756, %v754
        %v797 = vpack.c.b16 %v757, %v755
        %v798 = vpack.c.b16 %v760, %v758
        %v799 = vpack.c.b16 %v761, %v759
        %v800 = vpack.c.b16 %v764, %v762
        %v801 = vpack.c.b16 %v765, %v763
        %v802 = vpack.c.b16 %v768, %v766
        %v803 = vpack.c.b16 %v769, %v767
        %v804 = vpack.c.b16 %v772, %v770
        %v805 = vpack.c.b16 %v773, %v771
        %838 = vmatprep.subr.bf16.mxu0 %v775
        %839 = vmatpush1.bf16.msra.mxu0 %v774
        %840 = vmatprep.subr.bf16.mxu0 %v777
        %841 = vmatpush1.bf16.msra.mxu0 %v776
        %842 = vmatprep.subr.bf16.mxu0 %v779
        %843 = vmatpush1.bf16.msra.mxu0 %v778
        %844 = vmatprep.subr.bf16.mxu0 %v781
        %845 = vmatpush1.bf16.msra.mxu0 %v780
        %846 = vmatprep.subr.bf16.mxu0 %v783
        %847 = vmatpush1.bf16.msra.mxu0 %v782
        %848 = vmatprep.subr.bf16.mxu0 %v785
        %849 = vmatpush1.bf16.msra.mxu0 %v784
        %850 = vmatprep.subr.bf16.mxu0 %v787
        %851 = vmatpush1.bf16.msra.mxu0 %v786
        %852 = vmatprep.subr.bf16.mxu0 %v789
        %853 = vmatpush1.bf16.msra.mxu0 %v788
        %854 = vmatprep.subr.bf16.mxu0 %v791
        %855 = vmatpush1.bf16.msra.mxu0 %v790
        %856 = vmatprep.subr.bf16.mxu0 %v793
        %857 = vmatpush1.bf16.msra.mxu0 %v792
        %858 = vmatprep.subr.bf16.mxu0 %v795
        %859 = vmatpush1.bf16.msra.mxu0 %v794
        %860 = vmatprep.subr.bf16.mxu0 %v797
        %861 = vmatpush1.bf16.msra.mxu0 %v796
        %862 = vmatprep.subr.bf16.mxu0 %v799
        %863 = vmatpush1.bf16.msra.mxu0 %v798
        %864 = vmatprep.subr.bf16.mxu0 %v801
        %865 = vmatpush1.bf16.msra.mxu0 %v800
        %866 = vmatprep.subr.bf16.mxu0 %v803
        %867 = vmatpush1.bf16.msra.mxu0 %v802
        %868 = vmatprep.subr.bf16.mxu0 %v805
        %869 = vmatpush1.bf16.msra.mxu0 %v804
        %870 = vmatprep.mubr.bf16.mxu0 %v644
        %871 = vmatmul.mubr.bf16.gmra.mrb[0].mxu0 %v643
        %v872 = vpop.f32.mrb[0].mxu0
        %v873 = vadd.f32 0.0, %v872
        %v874 = vpop.f32.mrb[0].mxu0
        %v875 = vadd.f32 0.0, %v874
        %v876 = vpop.f32.mrb[0].mxu0
        %v877 = vpop.f32.mrb[0].mxu0
        %878 = vdwg.mxu0
        %v879 = vpack.c.bf16 %v398, %v398
        %v880 = vpack.c.bf16 %v400, %v400
        %s881 = scalar_lea.vmem [#allocation2], 512
        %v882 = vld [vmem:[%s881] sm:$0xff]
        %v883 = vld [vmem:[%s881 + $0x8] sm:$0xff]
        %v884 = vld [vmem:[%s881 + $0x10] sm:$0xff]
        %v885 = vld [vmem:[%s881 + $0x18] sm:$0xff]
        %v886 = vld [vmem:[%s881 + $0x20] sm:$0xff]
        %v887 = vld [vmem:[%s881 + $0x28] sm:$0xff]
        %v888 = vld [vmem:[%s881 + $0x30] sm:$0xff]
        %v889 = vld [vmem:[%s881 + $0x38] sm:$0xff]
        %v890 = vld [vmem:[%s881 + $0x40] sm:$0xff]
        %v891 = vld [vmem:[%s881 + $0x48] sm:$0xff]
        %v892 = vld [vmem:[%s881 + $0x50] sm:$0xff]
        %v893 = vld [vmem:[%s881 + $0x58] sm:$0xff]
        %v894 = vld [vmem:[%s881 + $0x60] sm:$0xff]
        %v895 = vld [vmem:[%s881 + $0x68] sm:$0xff]
        %v896 = vld [vmem:[%s881 + $0x70] sm:$0xff]
        %v897 = vld [vmem:[%s881 + $0x78] sm:$0xff]
        %v898 = vld [vmem:[%s881 + $0x80] sm:$0xff]
        %v899 = vld [vmem:[%s881 + $0x88] sm:$0xff]
        %v900 = vld [vmem:[%s881 + $0x90] sm:$0xff]
        %v901 = vld [vmem:[%s881 + $0x98] sm:$0xff]
        %v902 = vld [vmem:[%s881 + $0xa0] sm:$0xff]
        %v903 = vld [vmem:[%s881 + $0xa8] sm:$0xff]
        %v904 = vld [vmem:[%s881 + $0xb0] sm:$0xff]
        %v905 = vld [vmem:[%s881 + $0xb8] sm:$0xff]
        %v906 = vld [vmem:[%s881 + $0xc0] sm:$0xff]
        %v907 = vld [vmem:[%s881 + $0xc8] sm:$0xff]
        %v908 = vld [vmem:[%s881 + $0xd0] sm:$0xff]
        %v909 = vld [vmem:[%s881 + $0xd8] sm:$0xff]
        %v910 = vld [vmem:[%s881 + $0xe0] sm:$0xff]
        %v911 = vld [vmem:[%s881 + $0xe8] sm:$0xff]
        %v912 = vld [vmem:[%s881 + $0xf0] sm:$0xff]
        %v913 = vld [vmem:[%s881 + $0xf8] sm:$0xff]
        %v946 = vunpack.c.l.b16 %v882
        %v947 = vunpack.c.h.b16 %v882
        %v948 = vunpack.c.l.b16 %v883
        %v949 = vunpack.c.h.b16 %v883
        %v950 = vunpack.c.l.b16 %v884
        %v951 = vunpack.c.h.b16 %v884
        %v952 = vunpack.c.l.b16 %v885
        %v953 = vunpack.c.h.b16 %v885
        %v954 = vunpack.c.l.b16 %v886
        %v955 = vunpack.c.h.b16 %v886
        %v956 = vunpack.c.l.b16 %v887
        %v957 = vunpack.c.h.b16 %v887
        %v958 = vunpack.c.l.b16 %v888
        %v959 = vunpack.c.h.b16 %v888
        %v960 = vunpack.c.l.b16 %v889
        %v961 = vunpack.c.h.b16 %v889
        %v962 = vunpack.c.l.b16 %v890
        %v963 = vunpack.c.h.b16 %v890
        %v964 = vunpack.c.l.b16 %v891
        %v965 = vunpack.c.h.b16 %v891
        %v966 = vunpack.c.l.b16 %v892
        %v967 = vunpack.c.h.b16 %v892
        %v968 = vunpack.c.l.b16 %v893
        %v969 = vunpack.c.h.b16 %v893
        %v970 = vunpack.c.l.b16 %v894
        %v971 = vunpack.c.h.b16 %v894
        %v972 = vunpack.c.l.b16 %v895
        %v973 = vunpack.c.h.b16 %v895
        %v974 = vunpack.c.l.b16 %v896
        %v975 = vunpack.c.h.b16 %v896
        %v976 = vunpack.c.l.b16 %v897
        %v977 = vunpack.c.h.b16 %v897
        %v978 = vunpack.c.l.b16 %v898
        %v979 = vunpack.c.h.b16 %v898
        %v980 = vunpack.c.l.b16 %v899
        %v981 = vunpack.c.h.b16 %v899
        %v982 = vunpack.c.l.b16 %v900
        %v983 = vunpack.c.h.b16 %v900
        %v984 = vunpack.c.l.b16 %v901
        %v985 = vunpack.c.h.b16 %v901
        %v986 = vunpack.c.l.b16 %v902
        %v987 = vunpack.c.h.b16 %v902
        %v988 = vunpack.c.l.b16 %v903
        %v989 = vunpack.c.h.b16 %v903
        %v990 = vunpack.c.l.b16 %v904
        %v991 = vunpack.c.h.b16 %v904
        %v992 = vunpack.c.l.b16 %v905
        %v993 = vunpack.c.h.b16 %v905
        %v994 = vunpack.c.l.b16 %v906
        %v995 = vunpack.c.h.b16 %v906
        %v996 = vunpack.c.l.b16 %v907
        %v997 = vunpack.c.h.b16 %v907
        %v998 = vunpack.c.l.b16 %v908
        %v999 = vunpack.c.h.b16 %v908
        %v1000 = vunpack.c.l.b16 %v909
        %v1001 = vunpack.c.h.b16 %v909
        %v1002 = vunpack.c.l.b16 %v910
        %v1003 = vunpack.c.h.b16 %v910
        %v1004 = vunpack.c.l.b16 %v911
        %v1005 = vunpack.c.h.b16 %v911
        %v1006 = vunpack.c.l.b16 %v912
        %v1007 = vunpack.c.h.b16 %v912
        %v1008 = vunpack.c.l.b16 %v913
        %v1009 = vunpack.c.h.b16 %v913
        %v1010 = vpack.c.b16 %v948, %v946
        %v1011 = vpack.c.b16 %v949, %v947
        %v1012 = vpack.c.b16 %v952, %v950
        %v1013 = vpack.c.b16 %v953, %v951
        %v1014 = vpack.c.b16 %v956, %v954
        %v1015 = vpack.c.b16 %v957, %v955
        %v1016 = vpack.c.b16 %v960, %v958
        %v1017 = vpack.c.b16 %v961, %v959
        %v1018 = vpack.c.b16 %v964, %v962
        %v1019 = vpack.c.b16 %v965, %v963
        %v1020 = vpack.c.b16 %v968, %v966
        %v1021 = vpack.c.b16 %v969, %v967
        %v1022 = vpack.c.b16 %v972, %v970
        %v1023 = vpack.c.b16 %v973, %v971
        %v1024 = vpack.c.b16 %v976, %v974
        %v1025 = vpack.c.b16 %v977, %v975
        %v1026 = vpack.c.b16 %v980, %v978
        %v1027 = vpack.c.b16 %v981, %v979
        %v1028 = vpack.c.b16 %v984, %v982
        %v1029 = vpack.c.b16 %v985, %v983
        %v1030 = vpack.c.b16 %v988, %v986
        %v1031 = vpack.c.b16 %v989, %v987
        %v1032 = vpack.c.b16 %v992, %v990
        %v1033 = vpack.c.b16 %v993, %v991
        %v1034 = vpack.c.b16 %v996, %v994
        %v1035 = vpack.c.b16 %v997, %v995
        %v1036 = vpack.c.b16 %v1000, %v998
        %v1037 = vpack.c.b16 %v1001, %v999
        %v1038 = vpack.c.b16 %v1004, %v1002
        %v1039 = vpack.c.b16 %v1005, %v1003
        %v1040 = vpack.c.b16 %v1008, %v1006
        %v1041 = vpack.c.b16 %v1009, %v1007
        %1074 = vmatprep.subr.bf16.mxu0 %v1011
        %1075 = vmatpush1.bf16.msra.mxu0 %v1010
        %1076 = vmatprep.subr.bf16.mxu0 %v1013
        %1077 = vmatpush1.bf16.msra.mxu0 %v1012
        %1078 = vmatprep.subr.bf16.mxu0 %v1015
        %1079 = vmatpush1.bf16.msra.mxu0 %v1014
        %1080 = vmatprep.subr.bf16.mxu0 %v1017
        %1081 = vmatpush1.bf16.msra.mxu0 %v1016
        %1082 = vmatprep.subr.bf16.mxu0 %v1019
        %1083 = vmatpush1.bf16.msra.mxu0 %v1018
        %1084 = vmatprep.subr.bf16.mxu0 %v1021
        %1085 = vmatpush1.bf16.msra.mxu0 %v1020
        %1086 = vmatprep.subr.bf16.mxu0 %v1023
        %1087 = vmatpush1.bf16.msra.mxu0 %v1022
        %1088 = vmatprep.subr.bf16.mxu0 %v1025
        %1089 = vmatpush1.bf16.msra.mxu0 %v1024
        %1090 = vmatprep.subr.bf16.mxu0 %v1027
        %1091 = vmatpush1.bf16.msra.mxu0 %v1026
        %1092 = vmatprep.subr.bf16.mxu0 %v1029
        %1093 = vmatpush1.bf16.msra.mxu0 %v1028
        %1094 = vmatprep.subr.bf16.mxu0 %v1031
        %1095 = vmatpush1.bf16.msra.mxu0 %v1030
        %1096 = vmatprep.subr.bf16.mxu0 %v1033
        %1097 = vmatpush1.bf16.msra.mxu0 %v1032
        %1098 = vmatprep.subr.bf16.mxu0 %v1035
        %1099 = vmatpush1.bf16.msra.mxu0 %v1034
        %1100 = vmatprep.subr.bf16.mxu0 %v1037
        %1101 = vmatpush1.bf16.msra.mxu0 %v1036
        %1102 = vmatprep.subr.bf16.mxu0 %v1039
        %1103 = vmatpush1.bf16.msra.mxu0 %v1038
        %1104 = vmatprep.subr.bf16.mxu0 %v1041
        %1105 = vmatpush1.bf16.msra.mxu0 %v1040
        %1106 = vmatprep.mubr.bf16.mxu0 %v880
        %1107 = vmatmul.mubr.bf16.gmra.mrb[0].mxu0 %v879
        %v1108 = vpop.f32.mrb[0].mxu0
        %v1109 = vadd.f32 0.0, %v1108
        %v1110 = vpop.f32.mrb[0].mxu0
        %v1111 = vadd.f32 0.0, %v1110
        %v1112 = vpop.f32.mrb[0].mxu0
        %v1113 = vpop.f32.mrb[0].mxu0
        %1114 = vdwg.mxu0
        %v1115 = vpack.c.bf16 %v404, %v404
        %v1116 = vpack.c.bf16 %v406, %v406
        %s1117 = scalar_lea.vmem [#allocation2], 768
        %v1118 = vld [vmem:[%s1117] sm:$0xff]
        %v1119 = vld [vmem:[%s1117 + $0x8] sm:$0xff]
        %v1120 = vld [vmem:[%s1117 + $0x10] sm:$0xff]
        %v1121 = vld [vmem:[%s1117 + $0x18] sm:$0xff]
        %v1122 = vld [vmem:[%s1117 + $0x20] sm:$0xff]
        %v1123 = vld [vmem:[%s1117 + $0x28] sm:$0xff]
        %v1124 = vld [vmem:[%s1117 + $0x30] sm:$0xff]
        %v1125 = vld [vmem:[%s1117 + $0x38] sm:$0xff]
        %v1126 = vld [vmem:[%s1117 + $0x40] sm:$0xff]
        %v1127 = vld [vmem:[%s1117 + $0x48] sm:$0xff]
        %v1128 = vld [vmem:[%s1117 + $0x50] sm:$0xff]
        %v1129 = vld [vmem:[%s1117 + $0x58] sm:$0xff]
        %v1130 = vld [vmem:[%s1117 + $0x60] sm:$0xff]
        %v1131 = vld [vmem:[%s1117 + $0x68] sm:$0xff]
        %v1132 = vld [vmem:[%s1117 + $0x70] sm:$0xff]
        %v1133 = vld [vmem:[%s1117 + $0x78] sm:$0xff]
        %v1134 = vld [vmem:[%s1117 + $0x80] sm:$0xff]
        %v1135 = vld [vmem:[%s1117 + $0x88] sm:$0xff]
        %v1136 = vld [vmem:[%s1117 + $0x90] sm:$0xff]
        %v1137 = vld [vmem:[%s1117 + $0x98] sm:$0xff]
        %v1138 = vld [vmem:[%s1117 + $0xa0] sm:$0xff]
        %v1139 = vld [vmem:[%s1117 + $0xa8] sm:$0xff]
        %v1140 = vld [vmem:[%s1117 + $0xb0] sm:$0xff]
        %v1141 = vld [vmem:[%s1117 + $0xb8] sm:$0xff]
        %v1142 = vld [vmem:[%s1117 + $0xc0] sm:$0xff]
        %v1143 = vld [vmem:[%s1117 + $0xc8] sm:$0xff]
        %v1144 = vld [vmem:[%s1117 + $0xd0] sm:$0xff]
        %v1145 = vld [vmem:[%s1117 + $0xd8] sm:$0xff]
        %v1146 = vld [vmem:[%s1117 + $0xe0] sm:$0xff]
        %v1147 = vld [vmem:[%s1117 + $0xe8] sm:$0xff]
        %v1148 = vld [vmem:[%s1117 + $0xf0] sm:$0xff]
        %v1149 = vld [vmem:[%s1117 + $0xf8] sm:$0xff]
        %v1182 = vunpack.c.l.b16 %v1118
        %v1183 = vunpack.c.h.b16 %v1118
        %v1184 = vunpack.c.l.b16 %v1119
        %v1185 = vunpack.c.h.b16 %v1119
        %v1186 = vunpack.c.l.b16 %v1120
        %v1187 = vunpack.c.h.b16 %v1120
        %v1188 = vunpack.c.l.b16 %v1121
        %v1189 = vunpack.c.h.b16 %v1121
        %v1190 = vunpack.c.l.b16 %v1122
        %v1191 = vunpack.c.h.b16 %v1122
        %v1192 = vunpack.c.l.b16 %v1123
        %v1193 = vunpack.c.h.b16 %v1123
        %v1194 = vunpack.c.l.b16 %v1124
        %v1195 = vunpack.c.h.b16 %v1124
        %v1196 = vunpack.c.l.b16 %v1125
        %v1197 = vunpack.c.h.b16 %v1125
        %v1198 = vunpack.c.l.b16 %v1126
        %v1199 = vunpack.c.h.b16 %v1126
        %v1200 = vunpack.c.l.b16 %v1127
        %v1201 = vunpack.c.h.b16 %v1127
        %v1202 = vunpack.c.l.b16 %v1128
        %v1203 = vunpack.c.h.b16 %v1128
        %v1204 = vunpack.c.l.b16 %v1129
        %v1205 = vunpack.c.h.b16 %v1129
        %v1206 = vunpack.c.l.b16 %v1130
        %v1207 = vunpack.c.h.b16 %v1130
        %v1208 = vunpack.c.l.b16 %v1131
        %v1209 = vunpack.c.h.b16 %v1131
        %v1210 = vunpack.c.l.b16 %v1132
        %v1211 = vunpack.c.h.b16 %v1132
        %v1212 = vunpack.c.l.b16 %v1133
        %v1213 = vunpack.c.h.b16 %v1133
        %v1214 = vunpack.c.l.b16 %v1134
        %v1215 = vunpack.c.h.b16 %v1134
        %v1216 = vunpack.c.l.b16 %v1135
        %v1217 = vunpack.c.h.b16 %v1135
        %v1218 = vunpack.c.l.b16 %v1136
        %v1219 = vunpack.c.h.b16 %v1136
        %v1220 = vunpack.c.l.b16 %v1137
        %v1221 = vunpack.c.h.b16 %v1137
        %v1222 = vunpack.c.l.b16 %v1138
        %v1223 = vunpack.c.h.b16 %v1138
        %v1224 = vunpack.c.l.b16 %v1139
        %v1225 = vunpack.c.h.b16 %v1139
        %v1226 = vunpack.c.l.b16 %v1140
        %v1227 = vunpack.c.h.b16 %v1140
        %v1228 = vunpack.c.l.b16 %v1141
        %v1229 = vunpack.c.h.b16 %v1141
        %v1230 = vunpack.c.l.b16 %v1142
        %v1231 = vunpack.c.h.b16 %v1142
        %v1232 = vunpack.c.l.b16 %v1143
        %v1233 = vunpack.c.h.b16 %v1143
        %v1234 = vunpack.c.l.b16 %v1144
        %v1235 = vunpack.c.h.b16 %v1144
        %v1236 = vunpack.c.l.b16 %v1145
        %v1237 = vunpack.c.h.b16 %v1145
        %v1238 = vunpack.c.l.b16 %v1146
        %v1239 = vunpack.c.h.b16 %v1146
        %v1240 = vunpack.c.l.b16 %v1147
        %v1241 = vunpack.c.h.b16 %v1147
        %v1242 = vunpack.c.l.b16 %v1148
        %v1243 = vunpack.c.h.b16 %v1148
        %v1244 = vunpack.c.l.b16 %v1149
        %v1245 = vunpack.c.h.b16 %v1149
        %v1246 = vpack.c.b16 %v1184, %v1182
        %v1247 = vpack.c.b16 %v1185, %v1183
        %v1248 = vpack.c.b16 %v1188, %v1186
        %v1249 = vpack.c.b16 %v1189, %v1187
        %v1250 = vpack.c.b16 %v1192, %v1190
        %v1251 = vpack.c.b16 %v1193, %v1191
        %v1252 = vpack.c.b16 %v1196, %v1194
        %v1253 = vpack.c.b16 %v1197, %v1195
        %v1254 = vpack.c.b16 %v1200, %v1198
        %v1255 = vpack.c.b16 %v1201, %v1199
        %v1256 = vpack.c.b16 %v1204, %v1202
        %v1257 = vpack.c.b16 %v1205, %v1203
        %v1258 = vpack.c.b16 %v1208, %v1206
        %v1259 = vpack.c.b16 %v1209, %v1207
        %v1260 = vpack.c.b16 %v1212, %v1210
        %v1261 = vpack.c.b16 %v1213, %v1211
        %v1262 = vpack.c.b16 %v1216, %v1214
        %v1263 = vpack.c.b16 %v1217, %v1215
        %v1264 = vpack.c.b16 %v1220, %v1218
        %v1265 = vpack.c.b16 %v1221, %v1219
        %v1266 = vpack.c.b16 %v1224, %v1222
        %v1267 = vpack.c.b16 %v1225, %v1223
        %v1268 = vpack.c.b16 %v1228, %v1226
        %v1269 = vpack.c.b16 %v1229, %v1227
        %v1270 = vpack.c.b16 %v1232, %v1230
        %v1271 = vpack.c.b16 %v1233, %v1231
        %v1272 = vpack.c.b16 %v1236, %v1234
        %v1273 = vpack.c.b16 %v1237, %v1235
        %v1274 = vpack.c.b16 %v1240, %v1238
        %v1275 = vpack.c.b16 %v1241, %v1239
        %v1276 = vpack.c.b16 %v1244, %v1242
        %v1277 = vpack.c.b16 %v1245, %v1243
        %1310 = vmatprep.subr.bf16.mxu0 %v1247
        %1311 = vmatpush1.bf16.msra.mxu0 %v1246
        %1312 = vmatprep.subr.bf16.mxu0 %v1249
        %1313 = vmatpush1.bf16.msra.mxu0 %v1248
        %1314 = vmatprep.subr.bf16.mxu0 %v1251
        %1315 = vmatpush1.bf16.msra.mxu0 %v1250
        %1316 = vmatprep.subr.bf16.mxu0 %v1253
        %1317 = vmatpush1.bf16.msra.mxu0 %v1252
        %1318 = vmatprep.subr.bf16.mxu0 %v1255
        %1319 = vmatpush1.bf16.msra.mxu0 %v1254
        %1320 = vmatprep.subr.bf16.mxu0 %v1257
        %1321 = vmatpush1.bf16.msra.mxu0 %v1256
        %1322 = vmatprep.subr.bf16.mxu0 %v1259
        %1323 = vmatpush1.bf16.msra.mxu0 %v1258
        %1324 = vmatprep.subr.bf16.mxu0 %v1261
        %1325 = vmatpush1.bf16.msra.mxu0 %v1260
        %1326 = vmatprep.subr.bf16.mxu0 %v1263
        %1327 = vmatpush1.bf16.msra.mxu0 %v1262
        %1328 = vmatprep.subr.bf16.mxu0 %v1265
        %1329 = vmatpush1.bf16.msra.mxu0 %v1264
        %1330 = vmatprep.subr.bf16.mxu0 %v1267
        %1331 = vmatpush1.bf16.msra.mxu0 %v1266
        %1332 = vmatprep.subr.bf16.mxu0 %v1269
        %1333 = vmatpush1.bf16.msra.mxu0 %v1268
        %1334 = vmatprep.subr.bf16.mxu0 %v1271
        %1335 = vmatpush1.bf16.msra.mxu0 %v1270
        %1336 = vmatprep.subr.bf16.mxu0 %v1273
        %1337 = vmatpush1.bf16.msra.mxu0 %v1272
        %1338 = vmatprep.subr.bf16.mxu0 %v1275
        %1339 = vmatpush1.bf16.msra.mxu0 %v1274
        %1340 = vmatprep.subr.bf16.mxu0 %v1277
        %1341 = vmatpush1.bf16.msra.mxu0 %v1276
        %1342 = vmatprep.mubr.bf16.mxu0 %v1116
        %1343 = vmatmul.mubr.bf16.gmra.mrb[0].mxu0 %v1115
        %v1344 = vpop.f32.mrb[0].mxu0
        %v1345 = vadd.f32 0.0, %v1344
        %v1346 = vpop.f32.mrb[0].mxu0
        %v1347 = vadd.f32 0.0, %v1346
        %v1348 = vpop.f32.mrb[0].mxu0
        %v1349 = vpop.f32.mrb[0].mxu0
        %1350 = vdwg.mxu0
        %1352 = vrot.lane.b32.xlu0 %v637, 17
        %v1353 = vpop.permute.xlu0 %1352
        %1354 = vrot.lane.b32.xlu0 %v873, 17
        %v1355 = vpop.permute.xlu0 %1354
        %1356 = vrot.lane.b32.xlu0 %v1109, 17
        %v1357 = vpop.permute.xlu0 %1356
        %1358 = vrot.lane.b32.xlu0 %v1345, 17
        %v1359 = vpop.permute.xlu0 %1358
        %1360 = vrot.lane.b32.xlu0 %v294, 17
        %v1361 = vpop.permute.xlu0 %1360
        %1362 = vrot.lane.b32.xlu0 %v639, 17
        %v1363 = vpop.permute.xlu0 %1362
        %1364 = vrot.lane.b32.xlu0 %v875, 17
        %v1365 = vpop.permute.xlu0 %1364
        %1366 = vrot.lane.b32.xlu0 %v1111, 17
        %v1367 = vpop.permute.xlu0 %1366
        %1368 = vrot.lane.b32.xlu0 %v1347, 17
        %v1369 = vpop.permute.xlu0 %1368
        %1370 = vrot.lane.b32.xlu0 %v300, 17
        %v1371 = vpop.permute.xlu0 %1370
        %v1372 = vlaneseq
        %v1373 = vand.u32 %v1372, 127
        %vm1374 = vcmp.lt.s32.totalorder %v1373, 17
        %v1375 = vsel %vm1374, %v1353, %v1363
        %v1376 = vsel %vm1374, %v1355, %v1365
        %v1377 = vsel %vm1374, %v1357, %v1367
        %v1378 = vsel %vm1374, %v1359, %v1369
        %v1379 = vsel %vm1374, %v1361, %v1371
        %v1380 = vsel %vm1374, %v1363, %v1353
        %v1381 = vsel %vm1374, %v1365, %v1355
        %v1382 = vsel %vm1374, %v1367, %v1357
        %v1383 = vsel %vm1374, %v1369, %v1359
        %v1384 = vsel %vm1374, %v1371, %v1361
        %v1385 = vld [vmem:[%s3] sm:$0xff]
        %vm1386 = vcmask 293888
        %v1388 = vsel %vm1386, %v1385, 0
        %v1391 = vsel %vm314, %v1384, 0
        %v1394 = vsel %vm314, %v1379, 0
        %1396 = vmatprep.subr.mxu0 %v1375
        %1397 = vmatpush1.msra.mxu0 %v1380
        %1398 = vmatprep.subr.mxu0 %v1376
        %1399 = vmatpush1.msra.mxu0 %v1381
        %1400 = vmatprep.subr.mxu0 %v1377
        %1401 = vmatpush1.msra.mxu0 %v1382
        %1402 = vmatprep.subr.mxu0 %v1378
        %1403 = vmatpush1.msra.mxu0 %v1383
        %1404 = vmatprep.subr.mxu0 %v1394
        %1405 = vmatpush1.msra.mxu0 %v1391
        %1406 = vmatprep.subr.mxu0 0.0
        %1407 = vmatpush1.msra.mxu0 0.0
        %1408 = vmatprep.subr.mxu0 0.0
        %1409 = vmatpush1.msra.mxu0 0.0
        %1410 = vmatprep.subr.mxu0 0.0
        %1411 = vmatpush1.msra.mxu0 0.0
        %1412 = vmatprep.subr.mxu0 0.0
        %1413 = vmatpush1.msra.mxu0 0.0
        %1414 = vmatprep.subr.mxu0 0.0
        %1415 = vmatpush1.msra.mxu0 0.0
        %1416 = vmatprep.subr.mxu0 0.0
        %1417 = vmatpush1.msra.mxu0 0.0
        %1418 = vmatprep.subr.mxu0 0.0
        %1419 = vmatpush1.msra.mxu0 0.0
        %1420 = vmatprep.subr.mxu0 0.0
        %1421 = vmatpush1.msra.mxu0 0.0
        %1422 = vmatprep.subr.mxu0 0.0
        %1423 = vmatpush1.msra.mxu0 0.0
        %1424 = vmatprep.subr.mxu0 0.0
        %1425 = vmatpush1.msra.mxu0 0.0
        %1426 = vmatprep.subr.mxu0 0.0
        %1427 = vmatpush1.msra.mxu0 0.0
        %1428 = vmatprep.subr.mxu0 0.0
        %1429 = vmatpush1.msra.mxu0 0.0
        %1430 = vmatprep.subr.mxu0 0.0
        %1431 = vmatpush1.msra.mxu0 0.0
        %1432 = vmatprep.subr.mxu0 0.0
        %1433 = vmatpush1.msra.mxu0 0.0
        %1434 = vmatprep.subr.mxu0 0.0
        %1435 = vmatpush1.msra.mxu0 0.0
        %1436 = vmatprep.subr.mxu0 0.0
        %1437 = vmatpush1.msra.mxu0 0.0
        %1438 = vmatprep.subr.mxu0 0.0
        %1439 = vmatpush1.msra.mxu0 0.0
        %1440 = vmatprep.subr.mxu0 0.0
        %1441 = vmatpush1.msra.mxu0 0.0
        %1442 = vmatprep.subr.mxu0 0.0
        %1443 = vmatpush1.msra.mxu0 0.0
        %1444 = vmatprep.subr.mxu0 0.0
        %1445 = vmatpush1.msra.mxu0 0.0
        %1446 = vmatprep.subr.mxu0 0.0
        %1447 = vmatpush1.msra.mxu0 0.0
        %1448 = vmatprep.subr.mxu0 0.0
        %1449 = vmatpush1.msra.mxu0 0.0
        %1450 = vmatprep.subr.mxu0 0.0
        %1451 = vmatpush1.msra.mxu0 0.0
        %1452 = vmatprep.subr.mxu0 0.0
        %1453 = vmatpush1.msra.mxu0 0.0
        %1454 = vmatprep.subr.mxu0 0.0
        %1455 = vmatpush1.msra.mxu0 0.0
        %1456 = vmatprep.subr.mxu0 0.0
        %1457 = vmatpush1.msra.mxu0 0.0
        %1458 = vmatprep.subr.mxu0 0.0
        %1459 = vmatpush1.msra.mxu0 0.0
        %1460 = vmatprep.mubr.f32.mxu0 0.0
        %1461 = vmatmul.mubr.f32.gmra.mrb[0].mxu0 %v1388
        %v1462 = vpop.f32.mrb[0].mxu0
        %v1463 = vadd.f32 0.0, %v1462
        %v1464 = vpop.f32.mrb[0].mxu0
        %v1465 = vadd.f32 0.0, %v1464
        %1466 = vdwg.mxu0
        %v1467 = vld [vmem:[%s4] sm:$0x3]
        %v1469 = vlaneseq
        %v1470 = vshrl.u32 %v1469, 7
        %v1471 = vsub.s32 0, %v1470
        %v1472 = vrot.slane %v1467, %v1471
        %v1473 = vlaneseq
        %v1474 = vshrl.u32 %v1473, 7
        %v1475 = vsub.s32 1, %v1474
        %v1476 = vrot.slane %v1467, %v1475
        %v1479 = vmul.f32 %v1472, %v1463
        %v1480 = vmul.f32 %v1476, %v1465
        %v1481 = vadd.f32 %v1479, 0.0
        %v1482 = vadd.f32 %v1480, 0.0
        %1483 = vrot.lane.b32.xlu0 %v637, 16
        %v1484 = vpop.permute.xlu0 %1483
        %1485 = vrot.lane.b32.xlu0 %v873, 16
        %v1486 = vpop.permute.xlu0 %1485
        %1487 = vrot.lane.b32.xlu0 %v1109, 16
        %v1488 = vpop.permute.xlu0 %1487
        %1489 = vrot.lane.b32.xlu0 %v1345, 16
        %v1490 = vpop.permute.xlu0 %1489
        %1491 = vrot.lane.b32.xlu0 %v294, 16
        %v1492 = vpop.permute.xlu0 %1491
        %1493 = vrot.lane.b32.xlu0 %v639, 16
        %v1494 = vpop.permute.xlu0 %1493
        %1495 = vrot.lane.b32.xlu0 %v875, 16
        %v1496 = vpop.permute.xlu0 %1495
        %1497 = vrot.lane.b32.xlu0 %v1111, 16
        %v1498 = vpop.permute.xlu0 %1497
        %1499 = vrot.lane.b32.xlu0 %v1347, 16
        %v1500 = vpop.permute.xlu0 %1499
        %1501 = vrot.lane.b32.xlu0 %v300, 16
        %v1502 = vpop.permute.xlu0 %1501
        %vm1503 = vcmp.lt.s32.totalorder %v1373, 16
        %v1504 = vsel %vm1503, %v1484, %v1494
        %v1505 = vsel %vm1503, %v1486, %v1496
        %v1506 = vsel %vm1503, %v1488, %v1498
        %v1507 = vsel %vm1503, %v1490, %v1500
        %v1508 = vsel %vm1503, %v1492, %v1502
        %v1509 = vsel %vm1503, %v1494, %v1484
        %v1510 = vsel %vm1503, %v1496, %v1486
        %v1511 = vsel %vm1503, %v1498, %v1488
        %v1512 = vsel %vm1503, %v1500, %v1490
        %v1513 = vsel %vm1503, %v1502, %v1492
        %s1514 = scalar_lea.vmem %s3, 8
        %v1515 = vld [vmem:[%s1514] sm:$0xff]
        %v1517 = vsel %vm1386, %v1515, 0
        %v1520 = vsel %vm314, %v1513, 0
        %v1523 = vsel %vm314, %v1508, 0
        %1525 = vmatprep.subr.mxu0 %v1504
        %1526 = vmatpush1.msra.mxu0 %v1509
        %1527 = vmatprep.subr.mxu0 %v1505
        %1528 = vmatpush1.msra.mxu0 %v1510
        %1529 = vmatprep.subr.mxu0 %v1506
        %1530 = vmatpush1.msra.mxu0 %v1511
        %1531 = vmatprep.subr.mxu0 %v1507
        %1532 = vmatpush1.msra.mxu0 %v1512
        %1533 = vmatprep.subr.mxu0 %v1523
        %1534 = vmatpush1.msra.mxu0 %v1520
        %1535 = vmatprep.subr.mxu0 0.0
        %1536 = vmatpush1.msra.mxu0 0.0
        %1537 = vmatprep.subr.mxu0 0.0
        %1538 = vmatpush1.msra.mxu0 0.0
        %1539 = vmatprep.subr.mxu0 0.0
        %1540 = vmatpush1.msra.mxu0 0.0
        %1541 = vmatprep.subr.mxu0 0.0
        %1542 = vmatpush1.msra.mxu0 0.0
        %1543 = vmatprep.subr.mxu0 0.0
        %1544 = vmatpush1.msra.mxu0 0.0
        %1545 = vmatprep.subr.mxu0 0.0
        %1546 = vmatpush1.msra.mxu0 0.0
        %1547 = vmatprep.subr.mxu0 0.0
        %1548 = vmatpush1.msra.mxu0 0.0
        %1549 = vmatprep.subr.mxu0 0.0
        %1550 = vmatpush1.msra.mxu0 0.0
        %1551 = vmatprep.subr.mxu0 0.0
        %1552 = vmatpush1.msra.mxu0 0.0
        %1553 = vmatprep.subr.mxu0 0.0
        %1554 = vmatpush1.msra.mxu0 0.0
        %1555 = vmatprep.subr.mxu0 0.0
        %1556 = vmatpush1.msra.mxu0 0.0
        %1557 = vmatprep.subr.mxu0 0.0
        %1558 = vmatpush1.msra.mxu0 0.0
        %1559 = vmatprep.subr.mxu0 0.0
        %1560 = vmatpush1.msra.mxu0 0.0
        %1561 = vmatprep.subr.mxu0 0.0
        %1562 = vmatpush1.msra.mxu0 0.0
        %1563 = vmatprep.subr.mxu0 0.0
        %1564 = vmatpush1.msra.mxu0 0.0
        %1565 = vmatprep.subr.mxu0 0.0
        %1566 = vmatpush1.msra.mxu0 0.0
        %1567 = vmatprep.subr.mxu0 0.0
        %1568 = vmatpush1.msra.mxu0 0.0
        %1569 = vmatprep.subr.mxu0 0.0
        %1570 = vmatpush1.msra.mxu0 0.0
        %1571 = vmatprep.subr.mxu0 0.0
        %1572 = vmatpush1.msra.mxu0 0.0
        %1573 = vmatprep.subr.mxu0 0.0
        %1574 = vmatpush1.msra.mxu0 0.0
        %1575 = vmatprep.subr.mxu0 0.0
        %1576 = vmatpush1.msra.mxu0 0.0
        %1577 = vmatprep.subr.mxu0 0.0
        %1578 = vmatpush1.msra.mxu0 0.0
        %1579 = vmatprep.subr.mxu0 0.0
        %1580 = vmatpush1.msra.mxu0 0.0
        %1581 = vmatprep.subr.mxu0 0.0
        %1582 = vmatpush1.msra.mxu0 0.0
        %1583 = vmatprep.subr.mxu0 0.0
        %1584 = vmatpush1.msra.mxu0 0.0
        %1585 = vmatprep.subr.mxu0 0.0
        %1586 = vmatpush1.msra.mxu0 0.0
        %1587 = vmatprep.subr.mxu0 0.0
        %1588 = vmatpush1.msra.mxu0 0.0
        %1589 = vmatprep.mubr.f32.mxu0 0.0
        %1590 = vmatmul.mubr.f32.gmra.mrb[0].mxu0 %v1517
        %v1591 = vpop.f32.mrb[0].mxu0
        %v1592 = vadd.f32 0.0, %v1591
        %v1593 = vpop.f32.mrb[0].mxu0
        %v1594 = vadd.f32 0.0, %v1593
        %1595 = vdwg.mxu0
        %s1596 = scalar_lea.vmem %s4, 2
        %v1597 = vld [vmem:[%s1596] sm:$0x3]
        %v1599 = vlaneseq
        %v1600 = vshrl.u32 %v1599, 7
        %v1601 = vsub.s32 0, %v1600
        %v1602 = vrot.slane %v1597, %v1601
        %v1603 = vlaneseq
        %v1604 = vshrl.u32 %v1603, 7
        %v1605 = vsub.s32 1, %v1604
        %v1606 = vrot.slane %v1597, %v1605
        %v1609 = vmul.f32 %v1602, %v1592
        %v1610 = vmul.f32 %v1606, %v1594
        %v1611 = vadd.f32 %v1481, %v1609
        %v1612 = vadd.f32 %v1482, %v1610
        %1613 = vrot.lane.b32.xlu0 %v637, 15
        %v1614 = vpop.permute.xlu0 %1613
        %1615 = vrot.lane.b32.xlu0 %v873, 15
        %v1616 = vpop.permute.xlu0 %1615
        %1617 = vrot.lane.b32.xlu0 %v1109, 15
        %v1618 = vpop.permute.xlu0 %1617
        %1619 = vrot.lane.b32.xlu0 %v1345, 15
        %v1620 = vpop.permute.xlu0 %1619
        %1621 = vrot.lane.b32.xlu0 %v294, 15
        %v1622 = vpop.permute.xlu0 %1621
        %1623 = vrot.lane.b32.xlu0 %v639, 15
        %v1624 = vpop.permute.xlu0 %1623
        %1625 = vrot.lane.b32.xlu0 %v875, 15
        %v1626 = vpop.permute.xlu0 %1625
        %1627 = vrot.lane.b32.xlu0 %v1111, 15
        %v1628 = vpop.permute.xlu0 %1627
        %1629 = vrot.lane.b32.xlu0 %v1347, 15
        %v1630 = vpop.permute.xlu0 %1629
        %1631 = vrot.lane.b32.xlu0 %v300, 15
        %v1632 = vpop.permute.xlu0 %1631
        %vm1633 = vcmp.lt.s32.totalorder %v1373, 15
        %v1634 = vsel %vm1633, %v1614, %v1624
        %v1635 = vsel %vm1633, %v1616, %v1626
        %v1636 = vsel %vm1633, %v1618, %v1628
        %v1637 = vsel %vm1633, %v1620, %v1630
        %v1638 = vsel %vm1633, %v1622, %v1632
        %v1639 = vsel %vm1633, %v1624, %v1614
        %v1640 = vsel %vm1633, %v1626, %v1616
        %v1641 = vsel %vm1633, %v1628, %v1618
        %v1642 = vsel %vm1633, %v1630, %v1620
        %v1643 = vsel %vm1633, %v1632, %v1622
        %s1644 = scalar_lea.vmem %s3, 16
        %v1645 = vld [vmem:[%s1644] sm:$0xff]
        %v1647 = vsel %vm1386, %v1645, 0
        %v1650 = vsel %vm314, %v1643, 0
        %v1653 = vsel %vm314, %v1638, 0
        %1655 = vmatprep.subr.mxu0 %v1634
        %1656 = vmatpush1.msra.mxu0 %v1639
        %1657 = vmatprep.subr.mxu0 %v1635
        %1658 = vmatpush1.msra.mxu0 %v1640
        %1659 = vmatprep.subr.mxu0 %v1636
        %1660 = vmatpush1.msra.mxu0 %v1641
        %1661 = vmatprep.subr.mxu0 %v1637
        %1662 = vmatpush1.msra.mxu0 %v1642
        %1663 = vmatprep.subr.mxu0 %v1653
        %1664 = vmatpush1.msra.mxu0 %v1650
        %1665 = vmatprep.subr.mxu0 0.0
        %1666 = vmatpush1.msra.mxu0 0.0
        %1667 = vmatprep.subr.mxu0 0.0
        %1668 = vmatpush1.msra.mxu0 0.0
        %1669 = vmatprep.subr.mxu0 0.0
        %1670 = vmatpush1.msra.mxu0 0.0
        %1671 = vmatprep.subr.mxu0 0.0
        %1672 = vmatpush1.msra.mxu0 0.0
        %1673 = vmatprep.subr.mxu0 0.0
        %1674 = vmatpush1.msra.mxu0 0.0
        %1675 = vmatprep.subr.mxu0 0.0
        %1676 = vmatpush1.msra.mxu0 0.0
        %1677 = vmatprep.subr.mxu0 0.0
        %1678 = vmatpush1.msra.mxu0 0.0
        %1679 = vmatprep.subr.mxu0 0.0
        %1680 = vmatpush1.msra.mxu0 0.0
        %1681 = vmatprep.subr.mxu0 0.0
        %1682 = vmatpush1.msra.mxu0 0.0
        %1683 = vmatprep.subr.mxu0 0.0
        %1684 = vmatpush1.msra.mxu0 0.0
        %1685 = vmatprep.subr.mxu0 0.0
        %1686 = vmatpush1.msra.mxu0 0.0
        %1687 = vmatprep.subr.mxu0 0.0
        %1688 = vmatpush1.msra.mxu0 0.0
        %1689 = vmatprep.subr.mxu0 0.0
        %1690 = vmatpush1.msra.mxu0 0.0
        %1691 = vmatprep.subr.mxu0 0.0
        %1692 = vmatpush1.msra.mxu0 0.0
        %1693 = vmatprep.subr.mxu0 0.0
        %1694 = vmatpush1.msra.mxu0 0.0
        %1695 = vmatprep.subr.mxu0 0.0
        %1696 = vmatpush1.msra.mxu0 0.0
        %1697 = vmatprep.subr.mxu0 0.0
        %1698 = vmatpush1.msra.mxu0 0.0
        %1699 = vmatprep.subr.mxu0 0.0
        %1700 = vmatpush1.msra.mxu0 0.0
        %1701 = vmatprep.subr.mxu0 0.0
        %1702 = vmatpush1.msra.mxu0 0.0
        %1703 = vmatprep.subr.mxu0 0.0
        %1704 = vmatpush1.msra.mxu0 0.0
        %1705 = vmatprep.subr.mxu0 0.0
        %1706 = vmatpush1.msra.mxu0 0.0
        %1707 = vmatprep.subr.mxu0 0.0
        %1708 = vmatpush1.msra.mxu0 0.0
        %1709 = vmatprep.subr.mxu0 0.0
        %1710 = vmatpush1.msra.mxu0 0.0
        %1711 = vmatprep.subr.mxu0 0.0
        %1712 = vmatpush1.msra.mxu0 0.0
        %1713 = vmatprep.subr.mxu0 0.0
        %1714 = vmatpush1.msra.mxu0 0.0
        %1715 = vmatprep.subr.mxu0 0.0
        %1716 = vmatpush1.msra.mxu0 0.0
        %1717 = vmatprep.subr.mxu0 0.0
        %1718 = vmatpush1.msra.mxu0 0.0
        %1719 = vmatprep.mubr.f32.mxu0 0.0
        %1720 = vmatmul.mubr.f32.gmra.mrb[0].mxu0 %v1647
        %v1721 = vpop.f32.mrb[0].mxu0
        %v1722 = vadd.f32 0.0, %v1721
        %v1723 = vpop.f32.mrb[0].mxu0
        %v1724 = vadd.f32 0.0, %v1723
        %1725 = vdwg.mxu0
        %s1726 = scalar_lea.vmem %s4, 4
        %v1727 = vld [vmem:[%s1726] sm:$0x3]
        %v1729 = vlaneseq
        %v1730 = vshrl.u32 %v1729, 7
        %v1731 = vsub.s32 0, %v1730
        %v1732 = vrot.slane %v1727, %v1731
        %v1733 = vlaneseq
        %v1734 = vshrl.u32 %v1733, 7
        %v1735 = vsub.s32 1, %v1734
        %v1736 = vrot.slane %v1727, %v1735
        %v1739 = vmul.f32 %v1732, %v1722
        %v1740 = vmul.f32 %v1736, %v1724
        %v1741 = vadd.f32 %v1611, %v1739
        %v1742 = vadd.f32 %v1612, %v1740
        %1743 = vrot.lane.b32.xlu0 %v637, 1
        %v1744 = vpop.permute.xlu0 %1743
        %1745 = vrot.lane.b32.xlu0 %v873, 1
        %v1746 = vpop.permute.xlu0 %1745
        %1747 = vrot.lane.b32.xlu0 %v1109, 1
        %v1748 = vpop.permute.xlu0 %1747
        %1749 = vrot.lane.b32.xlu0 %v1345, 1
        %v1750 = vpop.permute.xlu0 %1749
        %1751 = vrot.lane.b32.xlu0 %v294, 1
        %v1752 = vpop.permute.xlu0 %1751
        %1753 = vrot.lane.b32.xlu0 %v639, 1
        %v1754 = vpop.permute.xlu0 %1753
        %1755 = vrot.lane.b32.xlu0 %v875, 1
        %v1756 = vpop.permute.xlu0 %1755
        %1757 = vrot.lane.b32.xlu0 %v1111, 1
        %v1758 = vpop.permute.xlu0 %1757
        %1759 = vrot.lane.b32.xlu0 %v1347, 1
        %v1760 = vpop.permute.xlu0 %1759
        %1761 = vrot.lane.b32.xlu0 %v300, 1
        %v1762 = vpop.permute.xlu0 %1761
        %vm1763 = vcmp.lt.s32.totalorder %v1373, 1
        %v1764 = vsel %vm1763, %v1744, %v1754
        %v1765 = vsel %vm1763, %v1746, %v1756
        %v1766 = vsel %vm1763, %v1748, %v1758
        %v1767 = vsel %vm1763, %v1750, %v1760
        %v1768 = vsel %vm1763, %v1752, %v1762
        %v1769 = vsel %vm1763, %v1754, %v1744
        %v1770 = vsel %vm1763, %v1756, %v1746
        %v1771 = vsel %vm1763, %v1758, %v1748
        %v1772 = vsel %vm1763, %v1760, %v1750
        %v1773 = vsel %vm1763, %v1762, %v1752
        %s1774 = scalar_lea.vmem %s3, 24
        %v1775 = vld [vmem:[%s1774] sm:$0xff]
        %v1777 = vsel %vm1386, %v1775, 0
        %v1780 = vsel %vm314, %v1773, 0
        %v1783 = vsel %vm314, %v1768, 0
        %1785 = vmatprep.subr.mxu0 %v1764
        %1786 = vmatpush1.msra.mxu0 %v1769
        %1787 = vmatprep.subr.mxu0 %v1765
        %1788 = vmatpush1.msra.mxu0 %v1770
        %1789 = vmatprep.subr.mxu0 %v1766
        %1790 = vmatpush1.msra.mxu0 %v1771
        %1791 = vmatprep.subr.mxu0 %v1767
        %1792 = vmatpush1.msra.mxu0 %v1772
        %1793 = vmatprep.subr.mxu0 %v1783
        %1794 = vmatpush1.msra.mxu0 %v1780
        %1795 = vmatprep.subr.mxu0 0.0
        %1796 = vmatpush1.msra.mxu0 0.0
        %1797 = vmatprep.subr.mxu0 0.0
        %1798 = vmatpush1.msra.mxu0 0.0
        %1799 = vmatprep.subr.mxu0 0.0
        %1800 = vmatpush1.msra.mxu0 0.0
        %1801 = vmatprep.subr.mxu0 0.0
        %1802 = vmatpush1.msra.mxu0 0.0
        %1803 = vmatprep.subr.mxu0 0.0
        %1804 = vmatpush1.msra.mxu0 0.0
        %1805 = vmatprep.subr.mxu0 0.0
        %1806 = vmatpush1.msra.mxu0 0.0
        %1807 = vmatprep.subr.mxu0 0.0
        %1808 = vmatpush1.msra.mxu0 0.0
        %1809 = vmatprep.subr.mxu0 0.0
        %1810 = vmatpush1.msra.mxu0 0.0
        %1811 = vmatprep.subr.mxu0 0.0
        %1812 = vmatpush1.msra.mxu0 0.0
        %1813 = vmatprep.subr.mxu0 0.0
        %1814 = vmatpush1.msra.mxu0 0.0
        %1815 = vmatprep.subr.mxu0 0.0
        %1816 = vmatpush1.msra.mxu0 0.0
        %1817 = vmatprep.subr.mxu0 0.0
        %1818 = vmatpush1.msra.mxu0 0.0
        %1819 = vmatprep.subr.mxu0 0.0
        %1820 = vmatpush1.msra.mxu0 0.0
        %1821 = vmatprep.subr.mxu0 0.0
        %1822 = vmatpush1.msra.mxu0 0.0
        %1823 = vmatprep.subr.mxu0 0.0
        %1824 = vmatpush1.msra.mxu0 0.0
        %1825 = vmatprep.subr.mxu0 0.0
        %1826 = vmatpush1.msra.mxu0 0.0
        %1827 = vmatprep.subr.mxu0 0.0
        %1828 = vmatpush1.msra.mxu0 0.0
        %1829 = vmatprep.subr.mxu0 0.0
        %1830 = vmatpush1.msra.mxu0 0.0
        %1831 = vmatprep.subr.mxu0 0.0
        %1832 = vmatpush1.msra.mxu0 0.0
        %1833 = vmatprep.subr.mxu0 0.0
        %1834 = vmatpush1.msra.mxu0 0.0
        %1835 = vmatprep.subr.mxu0 0.0
        %1836 = vmatpush1.msra.mxu0 0.0
        %1837 = vmatprep.subr.mxu0 0.0
        %1838 = vmatpush1.msra.mxu0 0.0
        %1839 = vmatprep.subr.mxu0 0.0
        %1840 = vmatpush1.msra.mxu0 0.0
        %1841 = vmatprep.subr.mxu0 0.0
        %1842 = vmatpush1.msra.mxu0 0.0
        %1843 = vmatprep.subr.mxu0 0.0
        %1844 = vmatpush1.msra.mxu0 0.0
        %1845 = vmatprep.subr.mxu0 0.0
        %1846 = vmatpush1.msra.mxu0 0.0
        %1847 = vmatprep.subr.mxu0 0.0
        %1848 = vmatpush1.msra.mxu0 0.0
        %1849 = vmatprep.mubr.f32.mxu0 0.0
        %1850 = vmatmul.mubr.f32.gmra.mrb[0].mxu0 %v1777
        %v1851 = vpop.f32.mrb[0].mxu0
        %v1852 = vadd.f32 0.0, %v1851
        %v1853 = vpop.f32.mrb[0].mxu0
        %v1854 = vadd.f32 0.0, %v1853
        %1855 = vdwg.mxu0
        %s1856 = scalar_lea.vmem %s4, 6
        %v1857 = vld [vmem:[%s1856] sm:$0x3]
        %v1859 = vlaneseq
        %v1860 = vshrl.u32 %v1859, 7
        %v1861 = vsub.s32 0, %v1860
        %v1862 = vrot.slane %v1857, %v1861
        %v1863 = vlaneseq
        %v1864 = vshrl.u32 %v1863, 7
        %v1865 = vsub.s32 1, %v1864
        %v1866 = vrot.slane %v1857, %v1865
        %v1869 = vmul.f32 %v1862, %v1852
        %v1870 = vmul.f32 %v1866, %v1854
        %v1871 = vadd.f32 %v1741, %v1869
        %v1872 = vadd.f32 %v1742, %v1870
        %s1873 = scalar_lea.vmem %s3, 32
        %v1874 = vld [vmem:[%s1873] sm:$0xff]
        %v1876 = vsel %vm1386, %v1874, 0
        %1878 = vmatprep.subr.mxu0 %v639
        %1879 = vmatpush1.msra.mxu0 %v637
        %1880 = vmatprep.subr.mxu0 %v875
        %1881 = vmatpush1.msra.mxu0 %v873
        %1882 = vmatprep.subr.mxu0 %v1111
        %1883 = vmatpush1.msra.mxu0 %v1109
        %1884 = vmatprep.subr.mxu0 %v1347
        %1885 = vmatpush1.msra.mxu0 %v1345
        %1886 = vmatprep.subr.mxu0 %v317
        %1887 = vmatpush1.msra.mxu0 %v315
        %1888 = vmatprep.subr.mxu0 0.0
        %1889 = vmatpush1.msra.mxu0 0.0
        %1890 = vmatprep.subr.mxu0 0.0
        %1891 = vmatpush1.msra.mxu0 0.0
        %1892 = vmatprep.subr.mxu0 0.0
        %1893 = vmatpush1.msra.mxu0 0.0
        %1894 = vmatprep.subr.mxu0 0.0
        %1895 = vmatpush1.msra.mxu0 0.0
        %1896 = vmatprep.subr.mxu0 0.0
        %1897 = vmatpush1.msra.mxu0 0.0
        %1898 = vmatprep.subr.mxu0 0.0
        %1899 = vmatpush1.msra.mxu0 0.0
        %1900 = vmatprep.subr.mxu0 0.0
        %1901 = vmatpush1.msra.mxu0 0.0
        %1902 = vmatprep.subr.mxu0 0.0
        %1903 = vmatpush1.msra.mxu0 0.0
        %1904 = vmatprep.subr.mxu0 0.0
        %1905 = vmatpush1.msra.mxu0 0.0
        %1906 = vmatprep.subr.mxu0 0.0
        %1907 = vmatpush1.msra.mxu0 0.0
        %1908 = vmatprep.subr.mxu0 0.0
        %1909 = vmatpush1.msra.mxu0 0.0
        %1910 = vmatprep.subr.mxu0 0.0
        %1911 = vmatpush1.msra.mxu0 0.0
        %1912 = vmatprep.subr.mxu0 0.0
        %1913 = vmatpush1.msra.mxu0 0.0
        %1914 = vmatprep.subr.mxu0 0.0
        %1915 = vmatpush1.msra.mxu0 0.0
        %1916 = vmatprep.subr.mxu0 0.0
        %1917 = vmatpush1.msra.mxu0 0.0
        %1918 = vmatprep.subr.mxu0 0.0
        %1919 = vmatpush1.msra.mxu0 0.0
        %1920 = vmatprep.subr.mxu0 0.0
        %1921 = vmatpush1.msra.mxu0 0.0
        %1922 = vmatprep.subr.mxu0 0.0
        %1923 = vmatpush1.msra.mxu0 0.0
        %1924 = vmatprep.subr.mxu0 0.0
        %1925 = vmatpush1.msra.mxu0 0.0
        %1926 = vmatprep.subr.mxu0 0.0
        %1927 = vmatpush1.msra.mxu0 0.0
        %1928 = vmatprep.subr.mxu0 0.0
        %1929 = vmatpush1.msra.mxu0 0.0
        %1930 = vmatprep.subr.mxu0 0.0
        %1931 = vmatpush1.msra.mxu0 0.0
        %1932 = vmatprep.subr.mxu0 0.0
        %1933 = vmatpush1.msra.mxu0 0.0
        %1934 = vmatprep.subr.mxu0 0.0
        %1935 = vmatpush1.msra.mxu0 0.0
        %1936 = vmatprep.subr.mxu0 0.0
        %1937 = vmatpush1.msra.mxu0 0.0
        %1938 = vmatprep.subr.mxu0 0.0
        %1939 = vmatpush1.msra.mxu0 0.0
        %1940 = vmatprep.subr.mxu0 0.0
        %1941 = vmatpush1.msra.mxu0 0.0
        %1942 = vmatprep.mubr.f32.mxu0 0.0
        %1943 = vmatmul.mubr.f32.gmra.mrb[0].mxu0 %v1876
        %v1944 = vpop.f32.mrb[0].mxu0
        %v1945 = vadd.f32 0.0, %v1944
        %v1946 = vpop.f32.mrb[0].mxu0
        %v1947 = vadd.f32 0.0, %v1946
        %1948 = vdwg.mxu0
        %s1949 = scalar_lea.vmem %s4, 8
        %v1950 = vld [vmem:[%s1949] sm:$0x3]
        %v1952 = vlaneseq
        %v1953 = vshrl.u32 %v1952, 7
        %v1954 = vsub.s32 0, %v1953
        %v1955 = vrot.slane %v1950, %v1954
        %v1956 = vlaneseq
        %v1957 = vshrl.u32 %v1956, 7
        %v1958 = vsub.s32 1, %v1957
        %v1959 = vrot.slane %v1950, %v1958
        %v1962 = vmul.f32 %v1955, %v1945
        %v1963 = vmul.f32 %v1959, %v1947
        %v1964 = vadd.f32 %v1871, %v1962
        %v1965 = vadd.f32 %v1872, %v1963
        %1966 = vrot.lane.b32.xlu0 %v637, 127
        %v1967 = vpop.permute.xlu0 %1966
        %1968 = vrot.lane.b32.xlu0 %v873, 127
        %v1969 = vpop.permute.xlu0 %1968
        %1970 = vrot.lane.b32.xlu0 %v1109, 127
        %v1971 = vpop.permute.xlu0 %1970
        %1972 = vrot.lane.b32.xlu0 %v1345, 127
        %v1973 = vpop.permute.xlu0 %1972
        %1974 = vrot.lane.b32.xlu0 %v294, 127
        %v1975 = vpop.permute.xlu0 %1974
        %1976 = vrot.lane.b32.xlu0 %v639, 127
        %v1977 = vpop.permute.xlu0 %1976
        %1978 = vrot.lane.b32.xlu0 %v875, 127
        %v1979 = vpop.permute.xlu0 %1978
        %1980 = vrot.lane.b32.xlu0 %v1111, 127
        %v1981 = vpop.permute.xlu0 %1980
        %1982 = vrot.lane.b32.xlu0 %v1347, 127
        %v1983 = vpop.permute.xlu0 %1982
        %1984 = vrot.lane.b32.xlu0 %v300, 127
        %v1985 = vpop.permute.xlu0 %1984
        %vm1986 = vcmp.lt.s32.totalorder %v1373, 127
        %v1987 = vsel %vm1986, %v1967, %v1977
        %v1988 = vsel %vm1986, %v1969, %v1979
        %v1989 = vsel %vm1986, %v1971, %v1981
        %v1990 = vsel %vm1986, %v1973, %v1983
        %v1991 = vsel %vm1986, %v1975, %v1985
        %v1992 = vsel %vm1986, %v1977, %v1967
        %v1993 = vsel %vm1986, %v1979, %v1969
        %v1994 = vsel %vm1986, %v1981, %v1971
        %v1995 = vsel %vm1986, %v1983, %v1973
        %v1996 = vsel %vm1986, %v1985, %v1975
        %s1997 = scalar_lea.vmem %s3, 40
        %v1998 = vld [vmem:[%s1997] sm:$0xff]
        %v2000 = vsel %vm1386, %v1998, 0
        %v2003 = vsel %vm314, %v1991, 0
        %v2006 = vsel %vm314, %v1996, 0
        %2008 = vmatprep.subr.mxu0 %v1992
        %2009 = vmatpush1.msra.mxu0 %v1987
        %2010 = vmatprep.subr.mxu0 %v1993
        %2011 = vmatpush1.msra.mxu0 %v1988
        %2012 = vmatprep.subr.mxu0 %v1994
        %2013 = vmatpush1.msra.mxu0 %v1989
        %2014 = vmatprep.subr.mxu0 %v1995
        %2015 = vmatpush1.msra.mxu0 %v1990
        %2016 = vmatprep.subr.mxu0 %v2006
        %2017 = vmatpush1.msra.mxu0 %v2003
        %2018 = vmatprep.subr.mxu0 0.0
        %2019 = vmatpush1.msra.mxu0 0.0
        %2020 = vmatprep.subr.mxu0 0.0
        %2021 = vmatpush1.msra.mxu0 0.0
        %2022 = vmatprep.subr.mxu0 0.0
        %2023 = vmatpush1.msra.mxu0 0.0
        %2024 = vmatprep.subr.mxu0 0.0
        %2025 = vmatpush1.msra.mxu0 0.0
        %2026 = vmatprep.subr.mxu0 0.0
        %2027 = vmatpush1.msra.mxu0 0.0
        %2028 = vmatprep.subr.mxu0 0.0
        %2029 = vmatpush1.msra.mxu0 0.0
        %2030 = vmatprep.subr.mxu0 0.0
        %2031 = vmatpush1.msra.mxu0 0.0
        %2032 = vmatprep.subr.mxu0 0.0
        %2033 = vmatpush1.msra.mxu0 0.0
        %2034 = vmatprep.subr.mxu0 0.0
        %2035 = vmatpush1.msra.mxu0 0.0
        %2036 = vmatprep.subr.mxu0 0.0
        %2037 = vmatpush1.msra.mxu0 0.0
        %2038 = vmatprep.subr.mxu0 0.0
        %2039 = vmatpush1.msra.mxu0 0.0
        %2040 = vmatprep.subr.mxu0 0.0
        %2041 = vmatpush1.msra.mxu0 0.0
        %2042 = vmatprep.subr.mxu0 0.0
        %2043 = vmatpush1.msra.mxu0 0.0
        %2044 = vmatprep.subr.mxu0 0.0
        %2045 = vmatpush1.msra.mxu0 0.0
        %2046 = vmatprep.subr.mxu0 0.0
        %2047 = vmatpush1.msra.mxu0 0.0
        %2048 = vmatprep.subr.mxu0 0.0
        %2049 = vmatpush1.msra.mxu0 0.0
        %2050 = vmatprep.subr.mxu0 0.0
        %2051 = vmatpush1.msra.mxu0 0.0
        %2052 = vmatprep.subr.mxu0 0.0
        %2053 = vmatpush1.msra.mxu0 0.0
        %2054 = vmatprep.subr.mxu0 0.0
        %2055 = vmatpush1.msra.mxu0 0.0
        %2056 = vmatprep.subr.mxu0 0.0
        %2057 = vmatpush1.msra.mxu0 0.0
        %2058 = vmatprep.subr.mxu0 0.0
        %2059 = vmatpush1.msra.mxu0 0.0
        %2060 = vmatprep.subr.mxu0 0.0
        %2061 = vmatpush1.msra.mxu0 0.0
        %2062 = vmatprep.subr.mxu0 0.0
        %2063 = vmatpush1.msra.mxu0 0.0
        %2064 = vmatprep.subr.mxu0 0.0
        %2065 = vmatpush1.msra.mxu0 0.0
        %2066 = vmatprep.subr.mxu0 0.0
        %2067 = vmatpush1.msra.mxu0 0.0
        %2068 = vmatprep.subr.mxu0 0.0
        %2069 = vmatpush1.msra.mxu0 0.0
        %2070 = vmatprep.subr.mxu0 0.0
        %2071 = vmatpush1.msra.mxu0 0.0
        %2072 = vmatprep.mubr.f32.mxu0 0.0
        %2073 = vmatmul.mubr.f32.gmra.mrb[0].mxu0 %v2000
        %v2074 = vpop.f32.mrb[0].mxu0
        %v2075 = vadd.f32 0.0, %v2074
        %v2076 = vpop.f32.mrb[0].mxu0
        %v2077 = vadd.f32 0.0, %v2076
        %2078 = vdwg.mxu0
        %s2079 = scalar_lea.vmem %s4, 10
        %v2080 = vld [vmem:[%s2079] sm:$0x3]
        %v2082 = vlaneseq
        %v2083 = vshrl.u32 %v2082, 7
        %v2084 = vsub.s32 0, %v2083
        %v2085 = vrot.slane %v2080, %v2084
        %v2086 = vlaneseq
        %v2087 = vshrl.u32 %v2086, 7
        %v2088 = vsub.s32 1, %v2087
        %v2089 = vrot.slane %v2080, %v2088
        %v2092 = vmul.f32 %v2085, %v2075
        %v2093 = vmul.f32 %v2089, %v2077
        %v2094 = vadd.f32 %v1964, %v2092
        %v2095 = vadd.f32 %v1965, %v2093
        %2096 = vrot.lane.b32.xlu0 %v637, 113
        %v2097 = vpop.permute.xlu0 %2096
        %2098 = vrot.lane.b32.xlu0 %v873, 113
        %v2099 = vpop.permute.xlu0 %2098
        %2100 = vrot.lane.b32.xlu0 %v1109, 113
        %v2101 = vpop.permute.xlu0 %2100
        %2102 = vrot.lane.b32.xlu0 %v1345, 113
        %v2103 = vpop.permute.xlu0 %2102
        %2104 = vrot.lane.b32.xlu0 %v294, 113
        %v2105 = vpop.permute.xlu0 %2104
        %2106 = vrot.lane.b32.xlu0 %v639, 113
        %v2107 = vpop.permute.xlu0 %2106
        %2108 = vrot.lane.b32.xlu0 %v875, 113
        %v2109 = vpop.permute.xlu0 %2108
        %2110 = vrot.lane.b32.xlu0 %v1111, 113
        %v2111 = vpop.permute.xlu0 %2110
        %2112 = vrot.lane.b32.xlu0 %v1347, 113
        %v2113 = vpop.permute.xlu0 %2112
        %2114 = vrot.lane.b32.xlu0 %v300, 113
        %v2115 = vpop.permute.xlu0 %2114
        %vm2116 = vcmp.lt.s32.totalorder %v1373, 113
        %v2117 = vsel %vm2116, %v2097, %v2107
        %v2118 = vsel %vm2116, %v2099, %v2109
        %v2119 = vsel %vm2116, %v2101, %v2111
        %v2120 = vsel %vm2116, %v2103, %v2113
        %v2121 = vsel %vm2116, %v2105, %v2115
        %v2122 = vsel %vm2116, %v2107, %v2097
        %v2123 = vsel %vm2116, %v2109, %v2099
        %v2124 = vsel %vm2116, %v2111, %v2101
        %v2125 = vsel %vm2116, %v2113, %v2103
        %v2126 = vsel %vm2116, %v2115, %v2105
        %s2127 = scalar_lea.vmem %s3, 48
        %v2128 = vld [vmem:[%s2127] sm:$0xff]
        %v2130 = vsel %vm1386, %v2128, 0
        %v2133 = vsel %vm314, %v2121, 0
        %v2136 = vsel %vm314, %v2126, 0
        %2138 = vmatprep.subr.mxu0 %v2122
        %2139 = vmatpush1.msra.mxu0 %v2117
        %2140 = vmatprep.subr.mxu0 %v2123
        %2141 = vmatpush1.msra.mxu0 %v2118
        %2142 = vmatprep.subr.mxu0 %v2124
        %2143 = vmatpush1.msra.mxu0 %v2119
        %2144 = vmatprep.subr.mxu0 %v2125
        %2145 = vmatpush1.msra.mxu0 %v2120
        %2146 = vmatprep.subr.mxu0 %v2136
        %2147 = vmatpush1.msra.mxu0 %v2133
        %2148 = vmatprep.subr.mxu0 0.0
        %2149 = vmatpush1.msra.mxu0 0.0
        %2150 = vmatprep.subr.mxu0 0.0
        %2151 = vmatpush1.msra.mxu0 0.0
        %2152 = vmatprep.subr.mxu0 0.0
        %2153 = vmatpush1.msra.mxu0 0.0
        %2154 = vmatprep.subr.mxu0 0.0
        %2155 = vmatpush1.msra.mxu0 0.0
        %2156 = vmatprep.subr.mxu0 0.0
        %2157 = vmatpush1.msra.mxu0 0.0
        %2158 = vmatprep.subr.mxu0 0.0
        %2159 = vmatpush1.msra.mxu0 0.0
        %2160 = vmatprep.subr.mxu0 0.0
        %2161 = vmatpush1.msra.mxu0 0.0
        %2162 = vmatprep.subr.mxu0 0.0
        %2163 = vmatpush1.msra.mxu0 0.0
        %2164 = vmatprep.subr.mxu0 0.0
        %2165 = vmatpush1.msra.mxu0 0.0
        %2166 = vmatprep.subr.mxu0 0.0
        %2167 = vmatpush1.msra.mxu0 0.0
        %2168 = vmatprep.subr.mxu0 0.0
        %2169 = vmatpush1.msra.mxu0 0.0
        %2170 = vmatprep.subr.mxu0 0.0
        %2171 = vmatpush1.msra.mxu0 0.0
        %2172 = vmatprep.subr.mxu0 0.0
        %2173 = vmatpush1.msra.mxu0 0.0
        %2174 = vmatprep.subr.mxu0 0.0
        %2175 = vmatpush1.msra.mxu0 0.0
        %2176 = vmatprep.subr.mxu0 0.0
        %2177 = vmatpush1.msra.mxu0 0.0
        %2178 = vmatprep.subr.mxu0 0.0
        %2179 = vmatpush1.msra.mxu0 0.0
        %2180 = vmatprep.subr.mxu0 0.0
        %2181 = vmatpush1.msra.mxu0 0.0
        %2182 = vmatprep.subr.mxu0 0.0
        %2183 = vmatpush1.msra.mxu0 0.0
        %2184 = vmatprep.subr.mxu0 0.0
        %2185 = vmatpush1.msra.mxu0 0.0
        %2186 = vmatprep.subr.mxu0 0.0
        %2187 = vmatpush1.msra.mxu0 0.0
        %2188 = vmatprep.subr.mxu0 0.0
        %2189 = vmatpush1.msra.mxu0 0.0
        %2190 = vmatprep.subr.mxu0 0.0
        %2191 = vmatpush1.msra.mxu0 0.0
        %2192 = vmatprep.subr.mxu0 0.0
        %2193 = vmatpush1.msra.mxu0 0.0
        %2194 = vmatprep.subr.mxu0 0.0
        %2195 = vmatpush1.msra.mxu0 0.0
        %2196 = vmatprep.subr.mxu0 0.0
        %2197 = vmatpush1.msra.mxu0 0.0
        %2198 = vmatprep.subr.mxu0 0.0
        %2199 = vmatpush1.msra.mxu0 0.0
        %2200 = vmatprep.subr.mxu0 0.0
        %2201 = vmatpush1.msra.mxu0 0.0
        %2202 = vmatprep.mubr.f32.mxu0 0.0
        %2203 = vmatmul.mubr.f32.gmra.mrb[0].mxu0 %v2130
        %v2204 = vpop.f32.mrb[0].mxu0
        %v2205 = vadd.f32 0.0, %v2204
        %v2206 = vpop.f32.mrb[0].mxu0
        %v2207 = vadd.f32 0.0, %v2206
        %2208 = vdwg.mxu0
        %s2209 = scalar_lea.vmem %s4, 12
        %v2210 = vld [vmem:[%s2209] sm:$0x3]
        %v2212 = vlaneseq
        %v2213 = vshrl.u32 %v2212, 7
        %v2214 = vsub.s32 0, %v2213
        %v2215 = vrot.slane %v2210, %v2214
        %v2216 = vlaneseq
        %v2217 = vshrl.u32 %v2216, 7
        %v2218 = vsub.s32 1, %v2217
        %v2219 = vrot.slane %v2210, %v2218
        %v2222 = vmul.f32 %v2215, %v2205
        %v2223 = vmul.f32 %v2219, %v2207
        %v2224 = vadd.f32 %v2094, %v2222
        %v2225 = vadd.f32 %v2095, %v2223
        %2226 = vrot.lane.b32.xlu0 %v637, 112
        %v2227 = vpop.permute.xlu0 %2226
        %2228 = vrot.lane.b32.xlu0 %v873, 112
        %v2229 = vpop.permute.xlu0 %2228
        %2230 = vrot.lane.b32.xlu0 %v1109, 112
        %v2231 = vpop.permute.xlu0 %2230
        %2232 = vrot.lane.b32.xlu0 %v1345, 112
        %v2233 = vpop.permute.xlu0 %2232
        %2234 = vrot.lane.b32.xlu0 %v294, 112
        %v2235 = vpop.permute.xlu0 %2234
        %2236 = vrot.lane.b32.xlu0 %v639, 112
        %v2237 = vpop.permute.xlu0 %2236
        %2238 = vrot.lane.b32.xlu0 %v875, 112
        %v2239 = vpop.permute.xlu0 %2238
        %2240 = vrot.lane.b32.xlu0 %v1111, 112
        %v2241 = vpop.permute.xlu0 %2240
        %2242 = vrot.lane.b32.xlu0 %v1347, 112
        %v2243 = vpop.permute.xlu0 %2242
        %2244 = vrot.lane.b32.xlu0 %v300, 112
        %v2245 = vpop.permute.xlu0 %2244
        %vm2246 = vcmp.lt.s32.totalorder %v1373, 112
        %v2247 = vsel %vm2246, %v2227, %v2237
        %v2248 = vsel %vm2246, %v2229, %v2239
        %v2249 = vsel %vm2246, %v2231, %v2241
        %v2250 = vsel %vm2246, %v2233, %v2243
        %v2251 = vsel %vm2246, %v2235, %v2245
        %v2252 = vsel %vm2246, %v2237, %v2227
        %v2253 = vsel %vm2246, %v2239, %v2229
        %v2254 = vsel %vm2246, %v2241, %v2231
        %v2255 = vsel %vm2246, %v2243, %v2233
        %v2256 = vsel %vm2246, %v2245, %v2235
        %s2257 = scalar_lea.vmem %s3, 56
        %v2258 = vld [vmem:[%s2257] sm:$0xff]
        %v2260 = vsel %vm1386, %v2258, 0
        %v2263 = vsel %vm314, %v2251, 0
        %v2266 = vsel %vm314, %v2256, 0
        %2268 = vmatprep.subr.mxu0 %v2252
        %2269 = vmatpush1.msra.mxu0 %v2247
        %2270 = vmatprep.subr.mxu0 %v2253
        %2271 = vmatpush1.msra.mxu0 %v2248
        %2272 = vmatprep.subr.mxu0 %v2254
        %2273 = vmatpush1.msra.mxu0 %v2249
        %2274 = vmatprep.subr.mxu0 %v2255
        %2275 = vmatpush1.msra.mxu0 %v2250
        %2276 = vmatprep.subr.mxu0 %v2266
        %2277 = vmatpush1.msra.mxu0 %v2263
        %2278 = vmatprep.subr.mxu0 0.0
        %2279 = vmatpush1.msra.mxu0 0.0
        %2280 = vmatprep.subr.mxu0 0.0
        %2281 = vmatpush1.msra.mxu0 0.0
        %2282 = vmatprep.subr.mxu0 0.0
        %2283 = vmatpush1.msra.mxu0 0.0
        %2284 = vmatprep.subr.mxu0 0.0
        %2285 = vmatpush1.msra.mxu0 0.0
        %2286 = vmatprep.subr.mxu0 0.0
        %2287 = vmatpush1.msra.mxu0 0.0
        %2288 = vmatprep.subr.mxu0 0.0
        %2289 = vmatpush1.msra.mxu0 0.0
        %2290 = vmatprep.subr.mxu0 0.0
        %2291 = vmatpush1.msra.mxu0 0.0
        %2292 = vmatprep.subr.mxu0 0.0
        %2293 = vmatpush1.msra.mxu0 0.0
        %2294 = vmatprep.subr.mxu0 0.0
        %2295 = vmatpush1.msra.mxu0 0.0
        %2296 = vmatprep.subr.mxu0 0.0
        %2297 = vmatpush1.msra.mxu0 0.0
        %2298 = vmatprep.subr.mxu0 0.0
        %2299 = vmatpush1.msra.mxu0 0.0
        %2300 = vmatprep.subr.mxu0 0.0
        %2301 = vmatpush1.msra.mxu0 0.0
        %2302 = vmatprep.subr.mxu0 0.0
        %2303 = vmatpush1.msra.mxu0 0.0
        %2304 = vmatprep.subr.mxu0 0.0
        %2305 = vmatpush1.msra.mxu0 0.0
        %2306 = vmatprep.subr.mxu0 0.0
        %2307 = vmatpush1.msra.mxu0 0.0
        %2308 = vmatprep.subr.mxu0 0.0
        %2309 = vmatpush1.msra.mxu0 0.0
        %2310 = vmatprep.subr.mxu0 0.0
        %2311 = vmatpush1.msra.mxu0 0.0
        %2312 = vmatprep.subr.mxu0 0.0
        %2313 = vmatpush1.msra.mxu0 0.0
        %2314 = vmatprep.subr.mxu0 0.0
        %2315 = vmatpush1.msra.mxu0 0.0
        %2316 = vmatprep.subr.mxu0 0.0
        %2317 = vmatpush1.msra.mxu0 0.0
        %2318 = vmatprep.subr.mxu0 0.0
        %2319 = vmatpush1.msra.mxu0 0.0
        %2320 = vmatprep.subr.mxu0 0.0
        %2321 = vmatpush1.msra.mxu0 0.0
        %2322 = vmatprep.subr.mxu0 0.0
        %2323 = vmatpush1.msra.mxu0 0.0
        %2324 = vmatprep.subr.mxu0 0.0
        %2325 = vmatpush1.msra.mxu0 0.0
        %2326 = vmatprep.subr.mxu0 0.0
        %2327 = vmatpush1.msra.mxu0 0.0
        %2328 = vmatprep.subr.mxu0 0.0
        %2329 = vmatpush1.msra.mxu0 0.0
        %2330 = vmatprep.subr.mxu0 0.0
        %2331 = vmatpush1.msra.mxu0 0.0
        %2332 = vmatprep.mubr.f32.mxu0 0.0
        %2333 = vmatmul.mubr.f32.gmra.mrb[0].mxu0 %v2260
        %v2334 = vpop.f32.mrb[0].mxu0
        %v2335 = vadd.f32 0.0, %v2334
        %v2336 = vpop.f32.mrb[0].mxu0
        %v2337 = vadd.f32 0.0, %v2336
        %2338 = vdwg.mxu0
        %s2339 = scalar_lea.vmem %s4, 14
        %v2340 = vld [vmem:[%s2339] sm:$0x3]
        %v2342 = vlaneseq
        %v2343 = vshrl.u32 %v2342, 7
        %v2344 = vsub.s32 0, %v2343
        %v2345 = vrot.slane %v2340, %v2344
        %v2346 = vlaneseq
        %v2347 = vshrl.u32 %v2346, 7
        %v2348 = vsub.s32 1, %v2347
        %v2349 = vrot.slane %v2340, %v2348
        %v2352 = vmul.f32 %v2345, %v2335
        %v2353 = vmul.f32 %v2349, %v2337
        %v2354 = vadd.f32 %v2224, %v2352
        %v2355 = vadd.f32 %v2225, %v2353
        %2356 = vrot.lane.b32.xlu0 %v637, 111
        %v2357 = vpop.permute.xlu0 %2356
        %2358 = vrot.lane.b32.xlu0 %v873, 111
        %v2359 = vpop.permute.xlu0 %2358
        %2360 = vrot.lane.b32.xlu0 %v1109, 111
        %v2361 = vpop.permute.xlu0 %2360
        %2362 = vrot.lane.b32.xlu0 %v1345, 111
        %v2363 = vpop.permute.xlu0 %2362
        %2364 = vrot.lane.b32.xlu0 %v294, 111
        %v2365 = vpop.permute.xlu0 %2364
        %2366 = vrot.lane.b32.xlu0 %v639, 111
        %v2367 = vpop.permute.xlu0 %2366
        %2368 = vrot.lane.b32.xlu0 %v875, 111
        %v2369 = vpop.permute.xlu0 %2368
        %2370 = vrot.lane.b32.xlu0 %v1111, 111
        %v2371 = vpop.permute.xlu0 %2370
        %2372 = vrot.lane.b32.xlu0 %v1347, 111
        %v2373 = vpop.permute.xlu0 %2372
        %2374 = vrot.lane.b32.xlu0 %v300, 111
        %v2375 = vpop.permute.xlu0 %2374
        %vm2376 = vcmp.lt.s32.totalorder %v1373, 111
        %v2377 = vsel %vm2376, %v2357, %v2367
        %v2378 = vsel %vm2376, %v2359, %v2369
        %v2379 = vsel %vm2376, %v2361, %v2371
        %v2380 = vsel %vm2376, %v2363, %v2373
        %v2381 = vsel %vm2376, %v2365, %v2375
        %v2382 = vsel %vm2376, %v2367, %v2357
        %v2383 = vsel %vm2376, %v2369, %v2359
        %v2384 = vsel %vm2376, %v2371, %v2361
        %v2385 = vsel %vm2376, %v2373, %v2363
        %v2386 = vsel %vm2376, %v2375, %v2365
        %s2387 = scalar_lea.vmem %s3, 64
        %v2388 = vld [vmem:[%s2387] sm:$0xff]
        %v2390 = vsel %vm1386, %v2388, 0
        %v2393 = vsel %vm314, %v2381, 0
        %v2396 = vsel %vm314, %v2386, 0
        %2398 = vmatprep.subr.mxu0 %v2382
        %2399 = vmatpush1.msra.mxu0 %v2377
        %2400 = vmatprep.subr.mxu0 %v2383
        %2401 = vmatpush1.msra.mxu0 %v2378
        %2402 = vmatprep.subr.mxu0 %v2384
        %2403 = vmatpush1.msra.mxu0 %v2379
        %2404 = vmatprep.subr.mxu0 %v2385
        %2405 = vmatpush1.msra.mxu0 %v2380
        %2406 = vmatprep.subr.mxu0 %v2396
        %2407 = vmatpush1.msra.mxu0 %v2393
        %2408 = vmatprep.subr.mxu0 0.0
        %2409 = vmatpush1.msra.mxu0 0.0
        %2410 = vmatprep.subr.mxu0 0.0
        %2411 = vmatpush1.msra.mxu0 0.0
        %2412 = vmatprep.subr.mxu0 0.0
        %2413 = vmatpush1.msra.mxu0 0.0
        %2414 = vmatprep.subr.mxu0 0.0
        %2415 = vmatpush1.msra.mxu0 0.0
        %2416 = vmatprep.subr.mxu0 0.0
        %2417 = vmatpush1.msra.mxu0 0.0
        %2418 = vmatprep.subr.mxu0 0.0
        %2419 = vmatpush1.msra.mxu0 0.0
        %2420 = vmatprep.subr.mxu0 0.0
        %2421 = vmatpush1.msra.mxu0 0.0
        %2422 = vmatprep.subr.mxu0 0.0
        %2423 = vmatpush1.msra.mxu0 0.0
        %2424 = vmatprep.subr.mxu0 0.0
        %2425 = vmatpush1.msra.mxu0 0.0
        %2426 = vmatprep.subr.mxu0 0.0
        %2427 = vmatpush1.msra.mxu0 0.0
        %2428 = vmatprep.subr.mxu0 0.0
        %2429 = vmatpush1.msra.mxu0 0.0
        %2430 = vmatprep.subr.mxu0 0.0
        %2431 = vmatpush1.msra.mxu0 0.0
        %2432 = vmatprep.subr.mxu0 0.0
        %2433 = vmatpush1.msra.mxu0 0.0
        %2434 = vmatprep.subr.mxu0 0.0
        %2435 = vmatpush1.msra.mxu0 0.0
        %2436 = vmatprep.subr.mxu0 0.0
        %2437 = vmatpush1.msra.mxu0 0.0
        %2438 = vmatprep.subr.mxu0 0.0
        %2439 = vmatpush1.msra.mxu0 0.0
        %2440 = vmatprep.subr.mxu0 0.0
        %2441 = vmatpush1.msra.mxu0 0.0
        %2442 = vmatprep.subr.mxu0 0.0
        %2443 = vmatpush1.msra.mxu0 0.0
        %2444 = vmatprep.subr.mxu0 0.0
        %2445 = vmatpush1.msra.mxu0 0.0
        %2446 = vmatprep.subr.mxu0 0.0
        %2447 = vmatpush1.msra.mxu0 0.0
        %2448 = vmatprep.subr.mxu0 0.0
        %2449 = vmatpush1.msra.mxu0 0.0
        %2450 = vmatprep.subr.mxu0 0.0
        %2451 = vmatpush1.msra.mxu0 0.0
        %2452 = vmatprep.subr.mxu0 0.0
        %2453 = vmatpush1.msra.mxu0 0.0
        %2454 = vmatprep.subr.mxu0 0.0
        %2455 = vmatpush1.msra.mxu0 0.0
        %2456 = vmatprep.subr.mxu0 0.0
        %2457 = vmatpush1.msra.mxu0 0.0
        %2458 = vmatprep.subr.mxu0 0.0
        %2459 = vmatpush1.msra.mxu0 0.0
        %2460 = vmatprep.subr.mxu0 0.0
        %2461 = vmatpush1.msra.mxu0 0.0
        %2462 = vmatprep.mubr.f32.mxu0 0.0
        %2463 = vmatmul.mubr.f32.gmra.mrb[0].mxu0 %v2390
        %v2464 = vpop.f32.mrb[0].mxu0
        %v2465 = vadd.f32 0.0, %v2464
        %v2466 = vpop.f32.mrb[0].mxu0
        %v2467 = vadd.f32 0.0, %v2466
        %2468 = vdwg.mxu0
        %s2469 = scalar_lea.vmem %s4, 16
        %v2470 = vld [vmem:[%s2469] sm:$0x3]
        %v2472 = vlaneseq
        %v2473 = vshrl.u32 %v2472, 7
        %v2474 = vsub.s32 0, %v2473
        %v2475 = vrot.slane %v2470, %v2474
        %v2476 = vlaneseq
        %v2477 = vshrl.u32 %v2476, 7
        %v2478 = vsub.s32 1, %v2477
        %v2479 = vrot.slane %v2470, %v2478
        %v2482 = vmul.f32 %v2475, %v2465
        %v2483 = vmul.f32 %v2479, %v2467
        %v2484 = vadd.f32 %v2354, %v2482
        %v2485 = vadd.f32 %v2355, %v2483
        %v2486 = vld [vmem:[%s5] sm:$0xff]
        %2488 = vset.pattern.permute.xlu0 0
        %2489 = vperm.xlu0 %2488, %v2486
        %v2490 = vpop.permute.xlu0 %2489
        %v2492 = vmul.f32 %v2484, %v2490
        %v2493 = vmul.f32 %v2485, %v2490
        %v2494 = vld [vmem:[%s6] sm:$0xff]
        %2496 = vset.pattern.permute.xlu0 0
        %2497 = vperm.xlu0 %2496, %v2494
        %v2498 = vpop.permute.xlu0 %2497
        %v2500 = vadd.f32 %v2492, %v2498
        %v2501 = vadd.f32 %v2493, %v2498
        %2502 = vst [vmem:[%s293] sm:$0xff] %v2500
        %2503 = vst [vmem:[%s293 + $0x8] sm:$0xff] %v2501
        %p2504 = scmp.lt.s32.totalorder %s19, 1
        %s2505 = scalar_select %p2504, %s19, 1
        %s2506 = smul.addr %s2505, 2
        %s2507 = smul.addr %s2506, 8
        %s2508 = scalar_lea.vmem %s7, %s2507
        // Predicated region
        $region53: #{psp_module_pallas.1} parent=47 // pred_check
          %p2509 = pneg %p189
        $region54: #{psp_module_pallas.1} parent=47 // pred_check_branch
          %2511 = sbr.rel (%p2509) target = $region56
        $region55: #{psp_module_pallas.1} parent=47 // pred_region
          _
        $region56: #{psp_module_pallas.1} parent=47 // pred_fallthru
          _
      $region48: #{psp_module_pallas.1} parent=5 // pred_fallthru
        _
      %p2512 = scmp.le.s32.totalorder 2, %s14
      // Predicated region
      $region57: #{psp_module_pallas.1} parent=5 // pred_check
        %p2513 = pneg %p2512
      $region58: #{psp_module_pallas.1} parent=5 // pred_check_branch
        %2515 = sbr.rel (%p2513) target = $region60
      $region59: #{psp_module_pallas.1} parent=5 // pred_region
        %s2516 = ssub.s32 %s14, 2
        // Predicated region
        $region61: #{psp_module_pallas.1} parent=59 // pred_check
          %p2517 = pneg %p195
        $region62: #{psp_module_pallas.1} parent=59 // pred_check_branch
          %2519 = sbr.rel (%p2517) target = $region64
        $region63: #{psp_module_pallas.1} parent=59 // pred_region
          %p2520 = scmp.lt.s32.totalorder %s20, 1
          %s2521 = scalar_select %p2520, %s20, 1
          %s2522 = smul.addr %s2521, 2
          %s2523 = smul.addr %s2522, 8
          %s2524 = scalar_lea.vmem %s7, %s2523
        $region64: #{psp_module_pallas.1} parent=59 // pred_fallthru
          _
      $region60: #{psp_module_pallas.1} parent=5 // pred_fallthru
        _
    $region6: #{psp_module_pallas.1} parent=1 // loop_footer
      %s18 = sadd.s32 1, %s14
    $region7: #{psp_module_pallas.1} parent=1 // loop_footer_branch
      %13 = sbr.rel target = $region3
    $region8: #{psp_module_pallas.1} parent=1 // loop_exit
      _
    %2525 = vsyncpa [#allocation3], 1
    %s2526 = scalar_lea.sflag [#allocation3], 1
    %2527 = vsyncpa %s2526, 1

</llo_original>
